<compile_context>
chip_gen: v6e
topology: v6e:2x2x1
jax: 0.10.0
libtpu: 0.0.40
codegen_flags: <defaults>
</compile_context>

<pallas_src>
import jax
import jax.numpy as jnp
import numpy as np
from jax import lax
from jax.experimental import pallas as pl
from jax.experimental.pallas import tpu as pltpu


# ----------------------------- fused Pallas kernel ---------------------------

def _make_kernel(nb, h, w, p, cin):
  """Builds the kernel body for a fixed (NB, H, W, P, Cin)."""
  hw = h * w
  ho, wo = h // 2, w // 2
  oowo = ho * wo
  l = nb * hw
  bf16, f32 = jnp.bfloat16, jnp.float32

  def _mod(x, m):
    if m & (m - 1) == 0:                       # power of two -> cheap AND
      return jnp.bitwise_and(x, m - 1)
    return jnp.remainder(x, m)

  def _read_ahead(v, d):
    # y[:, s] = v[:, (s + d) % l]   (lane rotation on the XLU)
    return pltpu.roll(v, (-d) % l, axis=1)

  def _conv3x3_replicate(x_f32, w_ref, masks, out_p):
    """3x3 conv, replicate pad 1, stride 1.

    x_f32: (c, l) f32, spatial flat in lanes (NB images back-to-back).
    w_ref: (9, out_p, c) bf16, tap t = (dy+1)*3 + (dx+1) (BN scale folded in).
    Returns (out_p, l) f32.
    """
    row0, rowlast, col0, collast = masks
    acc = jnp.zeros((out_p, l), f32)
    t = 0
    for dy in (-1, 0, 1):
      if dy == 0:
        v = x_f32
      else:
        v = _read_ahead(x_f32, dy * w)
        # replicate top / bottom row (also fixes the wrap across images).
        v = jnp.where(rowlast if dy == 1 else row0, x_f32, v)
      for dx in (-1, 0, 1):
        if dx == 0:
          tap = v
        else:
          tap = _read_ahead(v, dx)
          # replicate left / right column.
          tap = jnp.where(collast if dx == 1 else col0, v, tap)
        acc = acc + jnp.dot(w_ref[t], tap.astype(bf16),
                            preferred_element_type=f32)
        t += 1
    return acc

  def kernel(x_ref, w1_ref, w2_ref, w0_ref, mpool_ref, msub_ref, bias_ref,
             out_ref):
    # Per-channel BN biases, broadcast along lanes.
    b1 = bias_ref[:, 0:1]                     # (p, 1)
    b2 = bias_ref[:, 1:2]
    b0 = bias_ref[:, 2:3]

    # Edge masks for replicate padding (per image within the flattened lanes).
    flat = lax.broadcasted_iota(jnp.int32, (1, l), 1)
    pos = _mod(flat, hw)                      # position inside one image
    col = _mod(pos, w)
    row0 = pos < w
    rowlast = pos >= hw - w
    col0 = col == 0
    collast = col == w - 1
    masks = (row0, rowlast, col0, collast)

    x = x_ref[0]                              # (cin, l) f32

    # --- main branch, stage 1: type1 = conv3x3(replicate) + BN + ReLU --------
    y1 = jnp.maximum(_conv3x3_replicate(x, w1_ref, masks, p) + b1, 0.0)

    # --- main branch, stage 2: conv1 = conv3x3(replicate) + BN ----------------
    y2 = _conv3x3_replicate(y1, w2_ref, masks, p) + b2

    # --- pooling + identity, per image in the lane-flattened batch ------------
    y2b = y2.astype(bf16)
    xb = x.astype(bf16)
    mpool = mpool_ref[...]                    # (hw, oowo) 0/1 bf16
    msub = msub_ref[...]                      # (hw, oowo) 0/1 bf16
    w0 = w0_ref[...]                          # (p, cin) bf16 (BN scale folded)
    outs = []
    for b in range(nb):
      sl = slice(b * hw, (b + 1) * hw)
      # AvgPool2d(3, stride=2, pad=1, count_include_pad=True) at stride-2 only.
      pooled = jnp.dot(y2b[:, sl], mpool,
                       preferred_element_type=f32) * (1.0 / 9.0)   # (p, oowo)
      # identity: bn0(conv0(x[:, :, 1:-1, 1:-1])), 1x1 stride 2, zero pad 1.
      xs = jnp.dot(xb[:, sl], msub, preferred_element_type=f32)    # (cin, oowo)
      ident = jnp.dot(w0, xs.astype(bf16), preferred_element_type=f32)
      outs.append(pooled + ident)
    out = outs[0] if nb == 1 else jnp.concatenate(outs, axis=1)
    out_ref[0] = (out + b0).astype(out_ref.dtype)

  return kernel


# ----------------------------- wrapper ---------------------------------------

def _pool_and_subsample_matrices(h, w):
  """0/1 constants in (H*W, Ho*Wo) orientation (spatial-in-lanes layout)."""
  ho, wo = h // 2, w // 2
  i = np.arange(h)
  j = np.arange(w)
  oi = np.arange(ho)
  oj = np.arange(wo)
  # AvgPool2d(3, stride=2, pad=1): window membership (zero pad = missing term).
  row_in = np.abs(i[:, None] - 2 * oi[None, :]) <= 1            # (h, ho)
  col_in = np.abs(j[:, None] - 2 * oj[None, :]) <= 1            # (w, wo)
  mpool = (row_in[:, None, :, None] & col_in[None, :, None, :]).reshape(
      h * w, ho * wo)
  # conv0: tap x[2oi, 2oj]; zero where it lands on conv0's zero padding
  # (i.e. 2oi or 2oj outside [1, h-2] of the cropped input).
  row_sel = ((i[:, None] == 2 * oi[None, :])
             & (2 * oi[None, :] >= 1) & (2 * oi[None, :] <= h - 2))
  col_sel = ((j[:, None] == 2 * oj[None, :])
             & (2 * oj[None, :] >= 1) & (2 * oj[None, :] <= w - 2))
  msub = (row_sel[:, None, :, None] & col_sel[None, :, None, :]).reshape(
      h * w, ho * wo)
  return (jnp.asarray(mpool, jnp.bfloat16), jnp.asarray(msub, jnp.bfloat16))


def make_params(w0_oihw, w1_oihw, w2_oihw, bn1, bn2, bn0, h, w):
  """Fold eval-mode BN scales into the conv weights; pack taps for the kernel."""
  s1, b1 = bn1
  s2, b2 = bn2
  s0, b0 = bn0
  p, cin = w1_oihw.shape[0], w1_oihw.shape[1]
  # tap order t = ky*3 + kx ; weight[p, c, ky, kx] * s[p]  ->  (9, p, c) bf16
  w1_taps = (jnp.transpose(w1_oihw * s1[:, None, None, None], (2, 3, 0, 1))
             .reshape(9, p, cin).astype(jnp.bfloat16))
  w2_taps = (jnp.transpose(w2_oihw * s2[:, None, None, None], (2, 3, 0, 1))
             .reshape(9, p, p).astype(jnp.bfloat16))
  w0_mat = (w0_oihw[:, :, 0, 0] * s0[:, None]).astype(jnp.bfloat16)   # (p, cin)
  mpool, msub = _pool_and_subsample_matrices(h, w)
  bias = jnp.stack([b1, b2, b0], axis=1).astype(jnp.float32)          # (p, 3)
  return dict(w1=w1_taps, w2=w2_taps, w0=w0_mat,
              mpool=mpool, msub=msub, bias=bias)


def block_type3_forward(x, params, nb=None):
  """x: (N, Cin, H, W) f32 NCHW.  Returns (N, P, H//2, W//2) f32 NCHW."""
  n, cin, h, w = x.shape
  p = params["w0"].shape[0]
  ho, wo = h // 2, w // 2
  hw, oowo = h * w, ho * wo

  if nb is None:
    # Batch several images per grid step, but keep >= 2 grid steps when
    # possible so both v7x TensorCores get a "parallel" step.
    nb = 1
    for cand in (8, 4, 2):
      if n % cand == 0 and n // cand >= 2:
        nb = cand
        break
  assert n % nb == 0, "batch must be divisible by the per-step image count"
  g = n // nb
  l = nb * hw

  # (N, Cin, H, W) -> (G, Cin, NB*H*W): images flattened into the lane axis.
  x_in = x.reshape(g, nb, cin, hw).transpose(0, 2, 1, 3).reshape(g, cin, l)

  kernel = _make_kernel(nb, h, w, p, cin)
  out = pl.pallas_call(
      kernel,
      out_shape=jax.ShapeDtypeStruct((g, p, nb * oowo), jnp.float32),
      grid=(g,),
      in_specs=[
          pl.BlockSpec((1, cin, l), lambda i: (i, 0, 0)),      # x (lane-dense)
          pl.BlockSpec((9, p, cin), lambda i: (0, 0, 0)),      # w1 taps (BN folded)
          pl.BlockSpec((9, p, p), lambda i: (0, 0, 0)),        # w2 taps (BN folded)
          pl.BlockSpec((p, cin), lambda i: (0, 0)),            # w0 (BN folded)
          pl.BlockSpec((hw, oowo), lambda i: (0, 0)),          # avgpool selection
          pl.BlockSpec((hw, oowo), lambda i: (0, 0)),          # identity selection
          pl.BlockSpec((p, 3), lambda i: (0, 0)),              # biases b1,b2,b0
      ],
      out_specs=pl.BlockSpec((1, p, nb * oowo), lambda i: (i, 0, 0)),
      compiler_params=pltpu.CompilerParams(
          dimension_semantics=("parallel",)),
  )(x_in, params["w1"], params["w2"], params["w0"], params["mpool"],
    params["msub"], params["bias"])

  # (G, P, NB*Ho*Wo) -> (N, P, Ho, Wo)   (NCHW, matching PyTorch)
  return (out.reshape(g, p, nb, ho, wo).transpose(0, 2, 1, 3, 4)
             .reshape(n, p, ho, wo))


# ----------------------------- pure-JAX reference ----------------------------
# Mirrors the kernel numerics: matmul/conv operands rounded to bf16 (weights
# already stored bf16 with BN scale folded), f32 accumulation.

def reference_forward(x, params):
  f32, bf16 = jnp.float32, jnp.bfloat16
  w1 = params["w1"].astype(f32)          # (9, P, Cin)
  w2 = params["w2"].astype(f32)          # (9, P, P)
  w0 = params["w0"].astype(f32)          # (P, Cin)
  p, cin = w1.shape[1], w1.shape[2]
  bias = params["bias"]
  b1 = bias[:, 0].reshape(1, p, 1, 1)
  b2 = bias[:, 1].reshape(1, p, 1, 1)
  b0 = bias[:, 2].reshape(1, p, 1, 1)

  w1_oihw = jnp.transpose(w1.reshape(3, 3, p, cin), (2, 3, 0, 1))
  w2_oihw = jnp.transpose(w2.reshape(3, 3, p, p), (2, 3, 0, 1))

  def conv3x3_rep(inp, w_oihw):
    inp_p = jnp.pad(inp, ((0, 0), (0, 0), (1, 1), (1, 1)), mode="edge")
    return lax.conv_general_dilated(
        inp_p.astype(bf16).astype(f32), w_oihw, (1, 1), "VALID",
        dimension_numbers=("NCHW", "OIHW", "NCHW"),
        precision=lax.Precision.HIGHEST)

  y1 = jnp.maximum(conv3x3_rep(x, w1_oihw) + b1, 0.0)
  y2 = conv3x3_rep(y1, w2_oihw) + b2
  y2q = y2.astype(bf16).astype(f32)      # kernel pools bf16(y2)
  pooled = lax.reduce_window(
      y2q, 0.0, lax.add, (1, 1, 3, 3), (1, 1, 2, 2),
      padding=((0, 0), (0, 0), (1, 1), (1, 1))) * (1.0 / 9.0)

  xq = x.astype(bf16).astype(f32)        # kernel taps bf16(x) for the identity
  xc = xq[:, :, 1:-1, 1:-1]
  xcp = jnp.pad(xc, ((0, 0), (0, 0), (1, 1), (1, 1)))
  xs = xcp[:, :, ::2, ::2]                                    # (N, Cin, Ho, Wo)
  ident = jnp.einsum("pc,nchw->nphw", w0, xs,
                     precision=lax.Precision.HIGHEST) + b0
  return pooled + ident


# ----------------------------- main -------------------------------------------

if __name__ == "__main__":
  N, Cin, H, W = 2, 4, 16, 16
  P = 8  # planes

  keys = iter(jax.random.split(jax.random.PRNGKey(0), 20))

  x = jax.random.normal(next(keys), (N, Cin, H, W), jnp.float32)   # NCHW

  # Deterministic synthetic parameters (PyTorch OIHW layout).
  w0_oihw = 0.2 * jax.random.normal(next(keys), (P, Cin, 1, 1), jnp.float32)  # conv0 1x1
  w1_oihw = 0.2 * jax.random.normal(next(keys), (P, Cin, 3, 3), jnp.float32)  # type1.conv1
  w2_oihw = 0.2 * jax.random.normal(next(keys), (P, P, 3, 3), jnp.float32)    # conv1

  def bn_params(c, eps=1e-5):
    gamma = 1.0 + 0.1 * jax.random.normal(next(keys), (c,), jnp.float32)
    beta = 0.1 * jax.random.normal(next(keys), (c,), jnp.float32)
    mean = 0.1 * jax.random.normal(next(keys), (c,), jnp.float32)
    var = jnp.abs(jax.random.normal(next(keys), (c,), jnp.float32)) + 0.5
    scale = gamma / jnp.sqrt(var + eps)
    bias = beta - mean * scale
    return scale, bias

  s0, b0 = bn_params(P)  # bn0
  s1, b1 = bn_params(P)  # type1.bn1
  s2, b2 = bn_params(P)  # bn1

  params = make_params(w0_oihw, w1_oihw, w2_oihw, (s1, b1), (s2, b2), (s0, b0),
                       H, W)

  out = jax.jit(block_type3_forward)(x, params)
  jax.block_until_ready(out)

  ref = reference_forward(x, params)
  assert out.shape == (N, P, H // 2, W // 2)
  np.testing.assert_allclose(np.asarray(out), np.asarray(ref),
                             rtol=1e-3, atol=1e-3)
  print("KERNEL_OK")
</pallas_src>

<mosaic_0001>
module attributes {stable_mosaic.version = 11 : i64} {
  func.func @kernel(%arg0: i32, %arg1: memref<1x4x256xf32, #tpu.memory_space<vmem>>, %arg2: memref<9x8x4xbf16, #tpu.memory_space<vmem>>, %arg3: memref<9x8x8xbf16, #tpu.memory_space<vmem>>, %arg4: memref<8x4xbf16, #tpu.memory_space<vmem>>, %arg5: memref<256x64xbf16, #tpu.memory_space<vmem>>, %arg6: memref<256x64xbf16, #tpu.memory_space<vmem>>, %arg7: memref<8x3xf32, #tpu.memory_space<vmem>>, %arg8: memref<1x8x64xf32, #tpu.memory_space<vmem>>) attributes {dimension_semantics = [#tpu.dimension_semantics<parallel>], iteration_bounds = array<i64: 2>, scalar_prefetch = 0 : i64, scratch_operands = 0 : i64, tpu.core_type = #tpu.core_type<tc>, window_params = [{transform_indices = @transform_0, window_bounds = array<i64: 1, 4, 256>}, {pipeline_mode = #tpu.pipeline_mode<synchronous>, transform_indices = @transform_1, window_bounds = array<i64: 9, 8, 4>}, {pipeline_mode = #tpu.pipeline_mode<synchronous>, transform_indices = @transform_2, window_bounds = array<i64: 9, 8, 8>}, {pipeline_mode = #tpu.pipeline_mode<synchronous>, transform_indices = @transform_3, window_bounds = array<i64: 8, 4>}, {pipeline_mode = #tpu.pipeline_mode<synchronous>, transform_indices = @transform_4, window_bounds = array<i64: 256, 64>}, {pipeline_mode = #tpu.pipeline_mode<synchronous>, transform_indices = @transform_5, window_bounds = array<i64: 256, 64>}, {pipeline_mode = #tpu.pipeline_mode<synchronous>, transform_indices = @transform_6, window_bounds = array<i64: 8, 3>}, {transform_indices = @transform_7, window_bounds = array<i64: 1, 8, 64>}]} {
    %c0 = arith.constant 0 : index
    %c0_0 = arith.constant 0 : index
    %0 = vector.load %arg7[%c0, %c0_0] : memref<8x3xf32, #tpu.memory_space<vmem>>, vector<8x1xf32>
    %c0_1 = arith.constant 0 : index
    %c1 = arith.constant 1 : index
    %1 = vector.load %arg7[%c0_1, %c1] : memref<8x3xf32, #tpu.memory_space<vmem>>, vector<8x1xf32>
    %c0_2 = arith.constant 0 : index
    %c2 = arith.constant 2 : index
    %2 = vector.load %arg7[%c0_2, %c2] : memref<8x3xf32, #tpu.memory_space<vmem>>, vector<8x1xf32>
    %3 = tpu.iota {dimensions = array<i32: 1>} : vector<1x256xi32>
    %c255_i32 = arith.constant 255 : i32
    %4 = vector.broadcast %c255_i32 : i32 to vector<1x256xi32>
    %5 = arith.andi %3, %4 : vector<1x256xi32>
    %c15_i32 = arith.constant 15 : i32
    %6 = vector.broadcast %c15_i32 : i32 to vector<1x256xi32>
    %7 = arith.andi %5, %6 : vector<1x256xi32>
    %c16_i32 = arith.constant 16 : i32
    %8 = vector.broadcast %c16_i32 : i32 to vector<1x256xi32>
    %9 = arith.cmpi slt, %5, %8 : vector<1x256xi32>
    %c240_i32 = arith.constant 240 : i32
    %10 = vector.broadcast %c240_i32 : i32 to vector<1x256xi32>
    %11 = arith.cmpi sge, %5, %10 : vector<1x256xi32>
    %c0_i32 = arith.constant 0 : i32
    %12 = vector.broadcast %c0_i32 : i32 to vector<1x256xi32>
    %13 = arith.cmpi eq, %7, %12 : vector<1x256xi32>
    %c15_i32_3 = arith.constant 15 : i32
    %14 = vector.broadcast %c15_i32_3 : i32 to vector<1x256xi32>
    %15 = arith.cmpi eq, %7, %14 : vector<1x256xi32>
    %c0_4 = arith.constant 0 : index
    %c0_5 = arith.constant 0 : index
    %c0_6 = arith.constant 0 : index
    %16 = vector.load %arg1[%c0_4, %c0_5, %c0_6] : memref<1x4x256xf32, #tpu.memory_space<vmem>>, vector<1x4x256xf32>
    %17 = vector.shape_cast %16 : vector<1x4x256xf32> to vector<4x256xf32>
    %cst = arith.constant 0.000000e+00 : f32
    %18 = vector.broadcast %cst : f32 to vector<8x256xf32>
    %c16_i32_7 = arith.constant 16 : i32
    %19 = tpu.dynamic_rotate %17 by %c16_i32_7 dim 1 : vector<4x256xf32>, i32 -> vector<4x256xf32>
    %20 = vector.shape_cast %9 : vector<1x256xi1> to vector<1x256xi1>
    %21 = vector.broadcast %20 : vector<1x256xi1> to vector<4x256xi1>
    %22 = arith.select %21, %17, %19 : vector<4x256xi1>, vector<4x256xf32>
    %c1_i32 = arith.constant 1 : i32
    %23 = tpu.dynamic_rotate %22 by %c1_i32 dim 1 : vector<4x256xf32>, i32 -> vector<4x256xf32>
    %24 = vector.shape_cast %13 : vector<1x256xi1> to vector<1x256xi1>
    %25 = vector.broadcast %24 : vector<1x256xi1> to vector<4x256xi1>
    %26 = arith.select %25, %22, %23 : vector<4x256xi1>, vector<4x256xf32>
    %c0_8 = arith.constant 0 : index
    %c0_9 = arith.constant 0 : index
    %c0_10 = arith.constant 0 : index
    %27 = vector.load %arg2[%c0_8, %c0_9, %c0_10] : memref<9x8x4xbf16, #tpu.memory_space<vmem>>, vector<1x8x4xbf16>
    %28 = vector.shape_cast %27 : vector<1x8x4xbf16> to vector<8x4xbf16>
    %29 = arith.truncf %26 : vector<4x256xf32> to vector<4x256xbf16>
    %cst_11 = arith.constant dense<0.000000e+00> : vector<8x256xf32>
    %30 = tpu.matmul %28, %29, %cst_11 {dimension_numbers = #tpu.dot_dimension_numbers<[1], [0], [0], [1], [0, 0, 1, 1], [], []>} : vector<8x4xbf16>, vector<4x256xbf16>, vector<8x256xf32> -> vector<8x256xf32>
    %31 = arith.addf %18, %30 : vector<8x256xf32>
    %c1_12 = arith.constant 1 : index
    %c0_13 = arith.constant 0 : index
    %c0_14 = arith.constant 0 : index
    %32 = vector.load %arg2[%c1_12, %c0_13, %c0_14] : memref<9x8x4xbf16, #tpu.memory_space<vmem>>, vector<1x8x4xbf16>
    %33 = vector.shape_cast %32 : vector<1x8x4xbf16> to vector<8x4xbf16>
    %34 = arith.truncf %22 : vector<4x256xf32> to vector<4x256xbf16>
    %cst_15 = arith.constant dense<0.000000e+00> : vector<8x256xf32>
    %35 = tpu.matmul %33, %34, %cst_15 {dimension_numbers = #tpu.dot_dimension_numbers<[1], [0], [0], [1], [0, 0, 1, 1], [], []>} : vector<8x4xbf16>, vector<4x256xbf16>, vector<8x256xf32> -> vector<8x256xf32>
    %36 = arith.addf %31, %35 : vector<8x256xf32>
    %c255_i32_16 = arith.constant 255 : i32
    %37 = tpu.dynamic_rotate %22 by %c255_i32_16 dim 1 : vector<4x256xf32>, i32 -> vector<4x256xf32>
    %38 = vector.shape_cast %15 : vector<1x256xi1> to vector<1x256xi1>
    %39 = vector.broadcast %38 : vector<1x256xi1> to vector<4x256xi1>
    %40 = arith.select %39, %22, %37 : vector<4x256xi1>, vector<4x256xf32>
    %c2_17 = arith.constant 2 : index
    %c0_18 = arith.constant 0 : index
    %c0_19 = arith.constant 0 : index
    %41 = vector.load %arg2[%c2_17, %c0_18, %c0_19] : memref<9x8x4xbf16, #tpu.memory_space<vmem>>, vector<1x8x4xbf16>
    %42 = vector.shape_cast %41 : vector<1x8x4xbf16> to vector<8x4xbf16>
    %43 = arith.truncf %40 : vector<4x256xf32> to vector<4x256xbf16>
    %cst_20 = arith.constant dense<0.000000e+00> : vector<8x256xf32>
    %44 = tpu.matmul %42, %43, %cst_20 {dimension_numbers = #tpu.dot_dimension_numbers<[1], [0], [0], [1], [0, 0, 1, 1], [], []>} : vector<8x4xbf16>, vector<4x256xbf16>, vector<8x256xf32> -> vector<8x256xf32>
    %45 = arith.addf %36, %44 : vector<8x256xf32>
    %c1_i32_21 = arith.constant 1 : i32
    %46 = tpu.dynamic_rotate %17 by %c1_i32_21 dim 1 : vector<4x256xf32>, i32 -> vector<4x256xf32>
    %47 = vector.shape_cast %13 : vector<1x256xi1> to vector<1x256xi1>
    %48 = vector.broadcast %47 : vector<1x256xi1> to vector<4x256xi1>
    %49 = arith.select %48, %17, %46 : vector<4x256xi1>, vector<4x256xf32>
    %c3 = arith.constant 3 : index
    %c0_22 = arith.constant 0 : index
    %c0_23 = arith.constant 0 : index
    %50 = vector.load %arg2[%c3, %c0_22, %c0_23] : memref<9x8x4xbf16, #tpu.memory_space<vmem>>, vector<1x8x4xbf16>
    %51 = vector.shape_cast %50 : vector<1x8x4xbf16> to vector<8x4xbf16>
    %52 = arith.truncf %49 : vector<4x256xf32> to vector<4x256xbf16>
    %cst_24 = arith.constant dense<0.000000e+00> : vector<8x256xf32>
    %53 = tpu.matmul %51, %52, %cst_24 {dimension_numbers = #tpu.dot_dimension_numbers<[1], [0], [0], [1], [0, 0, 1, 1], [], []>} : vector<8x4xbf16>, vector<4x256xbf16>, vector<8x256xf32> -> vector<8x256xf32>
    %54 = arith.addf %45, %53 : vector<8x256xf32>
    %c4 = arith.constant 4 : index
    %c0_25 = arith.constant 0 : index
    %c0_26 = arith.constant 0 : index
    %55 = vector.load %arg2[%c4, %c0_25, %c0_26] : memref<9x8x4xbf16, #tpu.memory_space<vmem>>, vector<1x8x4xbf16>
    %56 = vector.shape_cast %55 : vector<1x8x4xbf16> to vector<8x4xbf16>
    %57 = arith.truncf %17 : vector<4x256xf32> to vector<4x256xbf16>
    %cst_27 = arith.constant dense<0.000000e+00> : vector<8x256xf32>
    %58 = tpu.matmul %56, %57, %cst_27 {dimension_numbers = #tpu.dot_dimension_numbers<[1], [0], [0], [1], [0, 0, 1, 1], [], []>} : vector<8x4xbf16>, vector<4x256xbf16>, vector<8x256xf32> -> vector<8x256xf32>
    %59 = arith.addf %54, %58 : vector<8x256xf32>
    %c255_i32_28 = arith.constant 255 : i32
    %60 = tpu.dynamic_rotate %17 by %c255_i32_28 dim 1 : vector<4x256xf32>, i32 -> vector<4x256xf32>
    %61 = vector.shape_cast %15 : vector<1x256xi1> to vector<1x256xi1>
    %62 = vector.broadcast %61 : vector<1x256xi1> to vector<4x256xi1>
    %63 = arith.select %62, %17, %60 : vector<4x256xi1>, vector<4x256xf32>
    %c5 = arith.constant 5 : index
    %c0_29 = arith.constant 0 : index
    %c0_30 = arith.constant 0 : index
    %64 = vector.load %arg2[%c5, %c0_29, %c0_30] : memref<9x8x4xbf16, #tpu.memory_space<vmem>>, vector<1x8x4xbf16>
    %65 = vector.shape_cast %64 : vector<1x8x4xbf16> to vector<8x4xbf16>
    %66 = arith.truncf %63 : vector<4x256xf32> to vector<4x256xbf16>
    %cst_31 = arith.constant dense<0.000000e+00> : vector<8x256xf32>
    %67 = tpu.matmul %65, %66, %cst_31 {dimension_numbers = #tpu.dot_dimension_numbers<[1], [0], [0], [1], [0, 0, 1, 1], [], []>} : vector<8x4xbf16>, vector<4x256xbf16>, vector<8x256xf32> -> vector<8x256xf32>
    %68 = arith.addf %59, %67 : vector<8x256xf32>
    %c240_i32_32 = arith.constant 240 : i32
    %69 = tpu.dynamic_rotate %17 by %c240_i32_32 dim 1 : vector<4x256xf32>, i32 -> vector<4x256xf32>
    %70 = vector.shape_cast %11 : vector<1x256xi1> to vector<1x256xi1>
    %71 = vector.broadcast %70 : vector<1x256xi1> to vector<4x256xi1>
    %72 = arith.select %71, %17, %69 : vector<4x256xi1>, vector<4x256xf32>
    %c1_i32_33 = arith.constant 1 : i32
    %73 = tpu.dynamic_rotate %72 by %c1_i32_33 dim 1 : vector<4x256xf32>, i32 -> vector<4x256xf32>
    %74 = vector.shape_cast %13 : vector<1x256xi1> to vector<1x256xi1>
    %75 = vector.broadcast %74 : vector<1x256xi1> to vector<4x256xi1>
    %76 = arith.select %75, %72, %73 : vector<4x256xi1>, vector<4x256xf32>
    %c6 = arith.constant 6 : index
    %c0_34 = arith.constant 0 : index
    %c0_35 = arith.constant 0 : index
    %77 = vector.load %arg2[%c6, %c0_34, %c0_35] : memref<9x8x4xbf16, #tpu.memory_space<vmem>>, vector<1x8x4xbf16>
    %78 = vector.shape_cast %77 : vector<1x8x4xbf16> to vector<8x4xbf16>
    %79 = arith.truncf %76 : vector<4x256xf32> to vector<4x256xbf16>
    %cst_36 = arith.constant dense<0.000000e+00> : vector<8x256xf32>
    %80 = tpu.matmul %78, %79, %cst_36 {dimension_numbers = #tpu.dot_dimension_numbers<[1], [0], [0], [1], [0, 0, 1, 1], [], []>} : vector<8x4xbf16>, vector<4x256xbf16>, vector<8x256xf32> -> vector<8x256xf32>
    %81 = arith.addf %68, %80 : vector<8x256xf32>
    %c7 = arith.constant 7 : index
    %c0_37 = arith.constant 0 : index
    %c0_38 = arith.constant 0 : index
    %82 = vector.load %arg2[%c7, %c0_37, %c0_38] : memref<9x8x4xbf16, #tpu.memory_space<vmem>>, vector<1x8x4xbf16>
    %83 = vector.shape_cast %82 : vector<1x8x4xbf16> to vector<8x4xbf16>
    %84 = arith.truncf %72 : vector<4x256xf32> to vector<4x256xbf16>
    %cst_39 = arith.constant dense<0.000000e+00> : vector<8x256xf32>
    %85 = tpu.matmul %83, %84, %cst_39 {dimension_numbers = #tpu.dot_dimension_numbers<[1], [0], [0], [1], [0, 0, 1, 1], [], []>} : vector<8x4xbf16>, vector<4x256xbf16>, vector<8x256xf32> -> vector<8x256xf32>
    %86 = arith.addf %81, %85 : vector<8x256xf32>
    %c255_i32_40 = arith.constant 255 : i32
    %87 = tpu.dynamic_rotate %72 by %c255_i32_40 dim 1 : vector<4x256xf32>, i32 -> vector<4x256xf32>
    %88 = vector.shape_cast %15 : vector<1x256xi1> to vector<1x256xi1>
    %89 = vector.broadcast %88 : vector<1x256xi1> to vector<4x256xi1>
    %90 = arith.select %89, %72, %87 : vector<4x256xi1>, vector<4x256xf32>
    %c8 = arith.constant 8 : index
    %c0_41 = arith.constant 0 : index
    %c0_42 = arith.constant 0 : index
    %91 = vector.load %arg2[%c8, %c0_41, %c0_42] : memref<9x8x4xbf16, #tpu.memory_space<vmem>>, vector<1x8x4xbf16>
    %92 = vector.shape_cast %91 : vector<1x8x4xbf16> to vector<8x4xbf16>
    %93 = arith.truncf %90 : vector<4x256xf32> to vector<4x256xbf16>
    %cst_43 = arith.constant dense<0.000000e+00> : vector<8x256xf32>
    %94 = tpu.matmul %92, %93, %cst_43 {dimension_numbers = #tpu.dot_dimension_numbers<[1], [0], [0], [1], [0, 0, 1, 1], [], []>} : vector<8x4xbf16>, vector<4x256xbf16>, vector<8x256xf32> -> vector<8x256xf32>
    %95 = arith.addf %86, %94 : vector<8x256xf32>
    %96 = vector.broadcast %0 : vector<8x1xf32> to vector<8x256xf32>
    %97 = arith.addf %95, %96 : vector<8x256xf32>
    %cst_44 = arith.constant 0.000000e+00 : f32
    %98 = vector.broadcast %cst_44 : f32 to vector<8x256xf32>
    %99 = arith.maximumf %97, %98 : vector<8x256xf32>
    %cst_45 = arith.constant 0.000000e+00 : f32
    %100 = vector.broadcast %cst_45 : f32 to vector<8x256xf32>
    %c16_i32_46 = arith.constant 16 : i32
    %101 = tpu.dynamic_rotate %99 by %c16_i32_46 dim 1 : vector<8x256xf32>, i32 -> vector<8x256xf32>
    %102 = vector.shape_cast %9 : vector<1x256xi1> to vector<1x256xi1>
    %103 = vector.broadcast %102 : vector<1x256xi1> to vector<8x256xi1>
    %104 = arith.select %103, %99, %101 : vector<8x256xi1>, vector<8x256xf32>
    %c1_i32_47 = arith.constant 1 : i32
    %105 = tpu.dynamic_rotate %104 by %c1_i32_47 dim 1 : vector<8x256xf32>, i32 -> vector<8x256xf32>
    %106 = vector.shape_cast %13 : vector<1x256xi1> to vector<1x256xi1>
    %107 = vector.broadcast %106 : vector<1x256xi1> to vector<8x256xi1>
    %108 = arith.select %107, %104, %105 : vector<8x256xi1>, vector<8x256xf32>
    %c0_48 = arith.constant 0 : index
    %c0_49 = arith.constant 0 : index
    %c0_50 = arith.constant 0 : index
    %109 = vector.load %arg3[%c0_48, %c0_49, %c0_50] : memref<9x8x8xbf16, #tpu.memory_space<vmem>>, vector<1x8x8xbf16>
    %110 = vector.shape_cast %109 : vector<1x8x8xbf16> to vector<8x8xbf16>
    %111 = arith.truncf %108 : vector<8x256xf32> to vector<8x256xbf16>
    %cst_51 = arith.constant dense<0.000000e+00> : vector<8x256xf32>
    %112 = tpu.matmul %110, %111, %cst_51 {dimension_numbers = #tpu.dot_dimension_numbers<[1], [0], [0], [1], [0, 0, 1, 1], [], []>} : vector<8x8xbf16>, vector<8x256xbf16>, vector<8x256xf32> -> vector<8x256xf32>
    %113 = arith.addf %100, %112 : vector<8x256xf32>
    %c1_52 = arith.constant 1 : index
    %c0_53 = arith.constant 0 : index
    %c0_54 = arith.constant 0 : index
    %114 = vector.load %arg3[%c1_52, %c0_53, %c0_54] : memref<9x8x8xbf16, #tpu.memory_space<vmem>>, vector<1x8x8xbf16>
    %115 = vector.shape_cast %114 : vector<1x8x8xbf16> to vector<8x8xbf16>
    %116 = arith.truncf %104 : vector<8x256xf32> to vector<8x256xbf16>
    %cst_55 = arith.constant dense<0.000000e+00> : vector<8x256xf32>
    %117 = tpu.matmul %115, %116, %cst_55 {dimension_numbers = #tpu.dot_dimension_numbers<[1], [0], [0], [1], [0, 0, 1, 1], [], []>} : vector<8x8xbf16>, vector<8x256xbf16>, vector<8x256xf32> -> vector<8x256xf32>
    %118 = arith.addf %113, %117 : vector<8x256xf32>
    %c255_i32_56 = arith.constant 255 : i32
    %119 = tpu.dynamic_rotate %104 by %c255_i32_56 dim 1 : vector<8x256xf32>, i32 -> vector<8x256xf32>
    %120 = vector.shape_cast %15 : vector<1x256xi1> to vector<1x256xi1>
    %121 = vector.broadcast %120 : vector<1x256xi1> to vector<8x256xi1>
    %122 = arith.select %121, %104, %119 : vector<8x256xi1>, vector<8x256xf32>
    %c2_57 = arith.constant 2 : index
    %c0_58 = arith.constant 0 : index
    %c0_59 = arith.constant 0 : index
    %123 = vector.load %arg3[%c2_57, %c0_58, %c0_59] : memref<9x8x8xbf16, #tpu.memory_space<vmem>>, vector<1x8x8xbf16>
    %124 = vector.shape_cast %123 : vector<1x8x8xbf16> to vector<8x8xbf16>
    %125 = arith.truncf %122 : vector<8x256xf32> to vector<8x256xbf16>
    %cst_60 = arith.constant dense<0.000000e+00> : vector<8x256xf32>
    %126 = tpu.matmul %124, %125, %cst_60 {dimension_numbers = #tpu.dot_dimension_numbers<[1], [0], [0], [1], [0, 0, 1, 1], [], []>} : vector<8x8xbf16>, vector<8x256xbf16>, vector<8x256xf32> -> vector<8x256xf32>
    %127 = arith.addf %118, %126 : vector<8x256xf32>
    %c1_i32_61 = arith.constant 1 : i32
    %128 = tpu.dynamic_rotate %99 by %c1_i32_61 dim 1 : vector<8x256xf32>, i32 -> vector<8x256xf32>
    %129 = vector.shape_cast %13 : vector<1x256xi1> to vector<1x256xi1>
    %130 = vector.broadcast %129 : vector<1x256xi1> to vector<8x256xi1>
    %131 = arith.select %130, %99, %128 : vector<8x256xi1>, vector<8x256xf32>
    %c3_62 = arith.constant 3 : index
    %c0_63 = arith.constant 0 : index
    %c0_64 = arith.constant 0 : index
    %132 = vector.load %arg3[%c3_62, %c0_63, %c0_64] : memref<9x8x8xbf16, #tpu.memory_space<vmem>>, vector<1x8x8xbf16>
    %133 = vector.shape_cast %132 : vector<1x8x8xbf16> to vector<8x8xbf16>
    %134 = arith.truncf %131 : vector<8x256xf32> to vector<8x256xbf16>
    %cst_65 = arith.constant dense<0.000000e+00> : vector<8x256xf32>
    %135 = tpu.matmul %133, %134, %cst_65 {dimension_numbers = #tpu.dot_dimension_numbers<[1], [0], [0], [1], [0, 0, 1, 1], [], []>} : vector<8x8xbf16>, vector<8x256xbf16>, vector<8x256xf32> -> vector<8x256xf32>
    %136 = arith.addf %127, %135 : vector<8x256xf32>
    %c4_66 = arith.constant 4 : index
    %c0_67 = arith.constant 0 : index
    %c0_68 = arith.constant 0 : index
    %137 = vector.load %arg3[%c4_66, %c0_67, %c0_68] : memref<9x8x8xbf16, #tpu.memory_space<vmem>>, vector<1x8x8xbf16>
    %138 = vector.shape_cast %137 : vector<1x8x8xbf16> to vector<8x8xbf16>
    %139 = arith.truncf %99 : vector<8x256xf32> to vector<8x256xbf16>
    %cst_69 = arith.constant dense<0.000000e+00> : vector<8x256xf32>
    %140 = tpu.matmul %138, %139, %cst_69 {dimension_numbers = #tpu.dot_dimension_numbers<[1], [0], [0], [1], [0, 0, 1, 1], [], []>} : vector<8x8xbf16>, vector<8x256xbf16>, vector<8x256xf32> -> vector<8x256xf32>
    %141 = arith.addf %136, %140 : vector<8x256xf32>
    %c255_i32_70 = arith.constant 255 : i32
    %142 = tpu.dynamic_rotate %99 by %c255_i32_70 dim 1 : vector<8x256xf32>, i32 -> vector<8x256xf32>
    %143 = vector.shape_cast %15 : vector<1x256xi1> to vector<1x256xi1>
    %144 = vector.broadcast %143 : vector<1x256xi1> to vector<8x256xi1>
    %145 = arith.select %144, %99, %142 : vector<8x256xi1>, vector<8x256xf32>
    %c5_71 = arith.constant 5 : index
    %c0_72 = arith.constant 0 : index
    %c0_73 = arith.constant 0 : index
    %146 = vector.load %arg3[%c5_71, %c0_72, %c0_73] : memref<9x8x8xbf16, #tpu.memory_space<vmem>>, vector<1x8x8xbf16>
    %147 = vector.shape_cast %146 : vector<1x8x8xbf16> to vector<8x8xbf16>
    %148 = arith.truncf %145 : vector<8x256xf32> to vector<8x256xbf16>
    %cst_74 = arith.constant dense<0.000000e+00> : vector<8x256xf32>
    %149 = tpu.matmul %147, %148, %cst_74 {dimension_numbers = #tpu.dot_dimension_numbers<[1], [0], [0], [1], [0, 0, 1, 1], [], []>} : vector<8x8xbf16>, vector<8x256xbf16>, vector<8x256xf32> -> vector<8x256xf32>
    %150 = arith.addf %141, %149 : vector<8x256xf32>
    %c240_i32_75 = arith.constant 240 : i32
    %151 = tpu.dynamic_rotate %99 by %c240_i32_75 dim 1 : vector<8x256xf32>, i32 -> vector<8x256xf32>
    %152 = vector.shape_cast %11 : vector<1x256xi1> to vector<1x256xi1>
    %153 = vector.broadcast %152 : vector<1x256xi1> to vector<8x256xi1>
    %154 = arith.select %153, %99, %151 : vector<8x256xi1>, vector<8x256xf32>
    %c1_i32_76 = arith.constant 1 : i32
    %155 = tpu.dynamic_rotate %154 by %c1_i32_76 dim 1 : vector<8x256xf32>, i32 -> vector<8x256xf32>
    %156 = vector.shape_cast %13 : vector<1x256xi1> to vector<1x256xi1>
    %157 = vector.broadcast %156 : vector<1x256xi1> to vector<8x256xi1>
    %158 = arith.select %157, %154, %155 : vector<8x256xi1>, vector<8x256xf32>
    %c6_77 = arith.constant 6 : index
    %c0_78 = arith.constant 0 : index
    %c0_79 = arith.constant 0 : index
    %159 = vector.load %arg3[%c6_77, %c0_78, %c0_79] : memref<9x8x8xbf16, #tpu.memory_space<vmem>>, vector<1x8x8xbf16>
    %160 = vector.shape_cast %159 : vector<1x8x8xbf16> to vector<8x8xbf16>
    %161 = arith.truncf %158 : vector<8x256xf32> to vector<8x256xbf16>
    %cst_80 = arith.constant dense<0.000000e+00> : vector<8x256xf32>
    %162 = tpu.matmul %160, %161, %cst_80 {dimension_numbers = #tpu.dot_dimension_numbers<[1], [0], [0], [1], [0, 0, 1, 1], [], []>} : vector<8x8xbf16>, vector<8x256xbf16>, vector<8x256xf32> -> vector<8x256xf32>
    %163 = arith.addf %150, %162 : vector<8x256xf32>
    %c7_81 = arith.constant 7 : index
    %c0_82 = arith.constant 0 : index
    %c0_83 = arith.constant 0 : index
    %164 = vector.load %arg3[%c7_81, %c0_82, %c0_83] : memref<9x8x8xbf16, #tpu.memory_space<vmem>>, vector<1x8x8xbf16>
    %165 = vector.shape_cast %164 : vector<1x8x8xbf16> to vector<8x8xbf16>
    %166 = arith.truncf %154 : vector<8x256xf32> to vector<8x256xbf16>
    %cst_84 = arith.constant dense<0.000000e+00> : vector<8x256xf32>
    %167 = tpu.matmul %165, %166, %cst_84 {dimension_numbers = #tpu.dot_dimension_numbers<[1], [0], [0], [1], [0, 0, 1, 1], [], []>} : vector<8x8xbf16>, vector<8x256xbf16>, vector<8x256xf32> -> vector<8x256xf32>
    %168 = arith.addf %163, %167 : vector<8x256xf32>
    %c255_i32_85 = arith.constant 255 : i32
    %169 = tpu.dynamic_rotate %154 by %c255_i32_85 dim 1 : vector<8x256xf32>, i32 -> vector<8x256xf32>
    %170 = vector.shape_cast %15 : vector<1x256xi1> to vector<1x256xi1>
    %171 = vector.broadcast %170 : vector<1x256xi1> to vector<8x256xi1>
    %172 = arith.select %171, %154, %169 : vector<8x256xi1>, vector<8x256xf32>
    %c8_86 = arith.constant 8 : index
    %c0_87 = arith.constant 0 : index
    %c0_88 = arith.constant 0 : index
    %173 = vector.load %arg3[%c8_86, %c0_87, %c0_88] : memref<9x8x8xbf16, #tpu.memory_space<vmem>>, vector<1x8x8xbf16>
    %174 = vector.shape_cast %173 : vector<1x8x8xbf16> to vector<8x8xbf16>
    %175 = arith.truncf %172 : vector<8x256xf32> to vector<8x256xbf16>
    %cst_89 = arith.constant dense<0.000000e+00> : vector<8x256xf32>
    %176 = tpu.matmul %174, %175, %cst_89 {dimension_numbers = #tpu.dot_dimension_numbers<[1], [0], [0], [1], [0, 0, 1, 1], [], []>} : vector<8x8xbf16>, vector<8x256xbf16>, vector<8x256xf32> -> vector<8x256xf32>
    %177 = arith.addf %168, %176 : vector<8x256xf32>
    %178 = vector.broadcast %1 : vector<8x1xf32> to vector<8x256xf32>
    %179 = arith.addf %177, %178 : vector<8x256xf32>
    %180 = arith.truncf %179 : vector<8x256xf32> to vector<8x256xbf16>
    %181 = arith.truncf %17 : vector<4x256xf32> to vector<4x256xbf16>
    %c0_90 = arith.constant 0 : index
    %c0_91 = arith.constant 0 : index
    %182 = vector.load %arg5[%c0_90, %c0_91] : memref<256x64xbf16, #tpu.memory_space<vmem>>, vector<256x64xbf16>
    %c0_92 = arith.constant 0 : index
    %c0_93 = arith.constant 0 : index
    %183 = vector.load %arg6[%c0_92, %c0_93] : memref<256x64xbf16, #tpu.memory_space<vmem>>, vector<256x64xbf16>
    %c0_94 = arith.constant 0 : index
    %c0_95 = arith.constant 0 : index
    %184 = vector.load %arg4[%c0_94, %c0_95] : memref<8x4xbf16, #tpu.memory_space<vmem>>, vector<8x4xbf16>
    %cst_96 = arith.constant dense<0.000000e+00> : vector<8x64xf32>
    %185 = tpu.matmul %180, %182, %cst_96 {dimension_numbers = #tpu.dot_dimension_numbers<[1], [0], [0], [1], [0, 0, 1, 1], [], []>} : vector<8x256xbf16>, vector<256x64xbf16>, vector<8x64xf32> -> vector<8x64xf32>
    %cst_97 = arith.constant 0.111111112 : f32
    %186 = vector.broadcast %cst_97 : f32 to vector<8x64xf32>
    %187 = arith.mulf %185, %186 : vector<8x64xf32>
    %cst_98 = arith.constant dense<0.000000e+00> : vector<4x64xf32>
    %188 = tpu.matmul %181, %183, %cst_98 {dimension_numbers = #tpu.dot_dimension_numbers<[1], [0], [0], [1], [0, 0, 1, 1], [], []>} : vector<4x256xbf16>, vector<256x64xbf16>, vector<4x64xf32> -> vector<4x64xf32>
    %189 = arith.truncf %188 : vector<4x64xf32> to vector<4x64xbf16>
    %cst_99 = arith.constant dense<0.000000e+00> : vector<8x64xf32>
    %190 = tpu.matmul %184, %189, %cst_99 {dimension_numbers = #tpu.dot_dimension_numbers<[1], [0], [0], [1], [0, 0, 1, 1], [], []>} : vector<8x4xbf16>, vector<4x64xbf16>, vector<8x64xf32> -> vector<8x64xf32>
    %191 = arith.addf %187, %190 : vector<8x64xf32>
    %192 = vector.broadcast %2 : vector<8x1xf32> to vector<8x64xf32>
    %193 = arith.addf %191, %192 : vector<8x64xf32>
    %c0_100 = arith.constant 0 : index
    %c0_101 = arith.constant 0 : index
    %c0_102 = arith.constant 0 : index
    %194 = vector.load %arg8[%c0_100, %c0_101, %c0_102] : memref<1x8x64xf32, #tpu.memory_space<vmem>>, vector<1x8x64xf32>
    %195 = vector.shape_cast %194 : vector<1x8x64xf32> to vector<8x64xf32>
    %196 = vector.shape_cast %193 : vector<8x64xf32> to vector<1x8x64xf32>
    tpu.vector_store %arg8[%c0_100, %c0_101, %c0_102], %196 {strides = array<i32>} : memref<1x8x64xf32, #tpu.memory_space<vmem>>, vector<1x8x64xf32>,
    return
  }
  func.func @transform_0(%arg0: i32) -> (i32, i32, i32) {
    %c0_i32 = arith.constant 0 : i32
    %c0_i32_0 = arith.constant 0 : i32
    %c0_i32_1 = arith.constant 0 : i32
    return %arg0, %c0_i32, %c0_i32_0 : i32, i32, i32
  }
  func.func @transform_1(%arg0: i32) -> (i32, i32, i32) {
    %c0_i32 = arith.constant 0 : i32
    %c0_i32_0 = arith.constant 0 : i32
    %c0_i32_1 = arith.constant 0 : i32
    %c0_i32_2 = arith.constant 0 : i32
    return %c0_i32, %c0_i32_0, %c0_i32_1 : i32, i32, i32
  }
  func.func @transform_2(%arg0: i32) -> (i32, i32, i32) {
    %c0_i32 = arith.constant 0 : i32
    %c0_i32_0 = arith.constant 0 : i32
    %c0_i32_1 = arith.constant 0 : i32
    %c0_i32_2 = arith.constant 0 : i32
    return %c0_i32, %c0_i32_0, %c0_i32_1 : i32, i32, i32
  }
  func.func @transform_3(%arg0: i32) -> (i32, i32) {
    %c0_i32 = arith.constant 0 : i32
    %c0_i32_0 = arith.constant 0 : i32
    %c0_i32_1 = arith.constant 0 : i32
    return %c0_i32, %c0_i32_0 : i32, i32
  }
  func.func @transform_4(%arg0: i32) -> (i32, i32) {
    %c0_i32 = arith.constant 0 : i32
    %c0_i32_0 = arith.constant 0 : i32
    %c0_i32_1 = arith.constant 0 : i32
    return %c0_i32, %c0_i32_0 : i32, i32
  }
  func.func @transform_5(%arg0: i32) -> (i32, i32) {
    %c0_i32 = arith.constant 0 : i32
    %c0_i32_0 = arith.constant 0 : i32
    %c0_i32_1 = arith.constant 0 : i32
    return %c0_i32, %c0_i32_0 : i32, i32
  }
  func.func @transform_6(%arg0: i32) -> (i32, i32) {
    %c0_i32 = arith.constant 0 : i32
    %c0_i32_0 = arith.constant 0 : i32
    %c0_i32_1 = arith.constant 0 : i32
    return %c0_i32, %c0_i32_0 : i32, i32
  }
  func.func @transform_7(%arg0: i32) -> (i32, i32, i32) {
    %c0_i32 = arith.constant 0 : i32
    %c0_i32_0 = arith.constant 0 : i32
    %c0_i32_1 = arith.constant 0 : i32
    return %arg0, %c0_i32, %c0_i32_0 : i32, i32, i32
  }
}

</mosaic_0001>

<llo_original>
// kernel: block_type3_forward.1
$region0: #{block_type3_forward.1}
  #allocation0 [shape = 'u32[]', space=smem, size = 0x4, offset = 0x4, fixed_abs, tag = 'smem constant byte address 0x4 - core index']
  #allocation1 [shape = 'u32[144,128]{1,0:T(1,128)}', space=vmem, size = 0x12000, scoped, tag = 'internal scratch']
  %s0 = inlined_call_operand.vmem [shape: f32[2,4,256], index: 0, kind: input, shape index: {}]
  %s1 = inlined_call_operand.vmem [shape: bf16[9,8,4], index: 1, kind: input, shape index: {}]
  %s2 = inlined_call_operand.vmem [shape: bf16[9,8,8], index: 2, kind: input, shape index: {}]
  %s3 = inlined_call_operand.vmem [shape: bf16[8,4], index: 3, kind: input, shape index: {}]
  %s4 = inlined_call_operand.vmem [shape: bf16[256,64], index: 4, kind: input, shape index: {}]
  %s5 = inlined_call_operand.vmem [shape: bf16[256,64], index: 5, kind: input, shape index: {}]
  %s6 = inlined_call_operand.vmem [shape: f32[8,3], index: 6, kind: input, shape index: {}]
  %s7 = inlined_call_operand.vmem [shape: f32[2,8,64], index: 7, kind: output, shape index: {}]
  %s8 = sld [smem:[#allocation0]]
  $region61: #{block_type3_forward.1} parent=0
    _
  %s10 = ssub.s32 1, %s8
  %s11 = scalar_select 0, %s10, %s8
  loop: start=0, step=1, limit=4
  $region2: #{block_type3_forward.1} parent=0 // loop_pre_header
    _
  $region3: #{block_type3_forward.1} parent=0 // loop_header
    %s13 = sphi 0, %s17
    %p14 = scmp.ge.s32.totalorder %s13, 4
    %s23 = sphi 0, %s25
    %s26 = sphi 0, %s23
    %s27 = sphi 0, %s26
    %s43 = sphi 0, %s27
    %s47 = sphi 0, %s47
    %s49 = sphi 0, %s47
    %s50 = sphi 0, %s49
    %s64 = sphi 0, %s50
    %s68 = sphi 0, %s68
    %s70 = sphi 0, %s68
    %s71 = sphi 0, %s70
    %s85 = sphi 0, %s71
    %s89 = sphi 0, %s89
    %s91 = sphi 0, %s89
    %s92 = sphi 0, %s91
    %s106 = sphi 0, %s92
    %s110 = sphi 0, %s110
    %s112 = sphi 0, %s110
    %s113 = sphi 0, %s112
    %s127 = sphi 0, %s113
    %s131 = sphi 0, %s131
    %s133 = sphi 0, %s131
    %s134 = sphi 0, %s133
    %s148 = sphi 0, %s134
    %s152 = sphi 0, %s152
    %s154 = sphi 0, %s152
    %s155 = sphi 0, %s154
    %s169 = sphi 0, %s155
    %s175 = sphi 0, %s177
    %s178 = sphi 0, %s175
    %s179 = sphi 0, %s178
    %s195 = sphi 0, %s179
  $region4: #{block_type3_forward.1} parent=0 // loop_header_branch
    %16 = sbr.rel (%p14) target = $region8
  $region5: #{block_type3_forward.1} parent=0 // loop_body
    %s18 = ssub.s32 %s13, 1
    %s19 = ssub.s32 %s13, 2
    %s20 = sadd.s32 %s13, 1
    %s21 = ssub.s32 %s13, %s20
    %p22 = scmp.eq.s32.totalorder %s21, 0
    %s24 = sadd.s32 %s23, 1
    %s25 = scalar_select %p22, %s23, %s24
    %p28 = pneg %p22
    %p29 = scmp.eq.s32.totalorder %s13, 1
    %p30 = por %p28, %p29
    %p31 = scmp.ne.s32.totalorder %s23, %s26
    %p32 = scmp.eq.s32.totalorder %s13, 0
    %p33 = por %p31, %p32
    %p34 = scmp.ne.s32.totalorder %s23, %s26
    %p35 = scmp.eq.s32.totalorder %s18, 1
    %p36 = por %p34, %p35
    %p37 = scmp.ne.s32.totalorder %s26, %s27
    %p38 = scmp.eq.s32.totalorder %s18, 0
    %p39 = por %p37, %p38
    %p40 = scmp.ne.s32.totalorder %s26, %s27
    %p41 = scmp.eq.s32.totalorder %s19, 1
    %p42 = por %p40, %p41
    %p44 = scmp.ne.s32.totalorder %s27, %s43
    %p45 = scmp.eq.s32.totalorder %s19, 0
    %p46 = por %p44, %p45
    %s48 = sadd.s32 %s47, 1
    %p51 = scmp.eq.s32.totalorder %s13, 1
    %p52 = scmp.ne.s32.totalorder %s47, %s49
    %p53 = scmp.eq.s32.totalorder %s13, 0
    %p54 = por %p52, %p53
    %p55 = scmp.ne.s32.totalorder %s47, %s49
    %p56 = scmp.eq.s32.totalorder %s18, 1
    %p57 = por %p55, %p56
    %p58 = scmp.ne.s32.totalorder %s49, %s50
    %p59 = scmp.eq.s32.totalorder %s18, 0
    %p60 = por %p58, %p59
    %p61 = scmp.ne.s32.totalorder %s49, %s50
    %p62 = scmp.eq.s32.totalorder %s19, 1
    %p63 = por %p61, %p62
    %p65 = scmp.ne.s32.totalorder %s50, %s64
    %p66 = scmp.eq.s32.totalorder %s19, 0
    %p67 = por %p65, %p66
    %s69 = sadd.s32 %s68, 1
    %p72 = scmp.eq.s32.totalorder %s13, 1
    %p73 = scmp.ne.s32.totalorder %s68, %s70
    %p74 = scmp.eq.s32.totalorder %s13, 0
    %p75 = por %p73, %p74
    %p76 = scmp.ne.s32.totalorder %s68, %s70
    %p77 = scmp.eq.s32.totalorder %s18, 1
    %p78 = por %p76, %p77
    %p79 = scmp.ne.s32.totalorder %s70, %s71
    %p80 = scmp.eq.s32.totalorder %s18, 0
    %p81 = por %p79, %p80
    %p82 = scmp.ne.s32.totalorder %s70, %s71
    %p83 = scmp.eq.s32.totalorder %s19, 1
    %p84 = por %p82, %p83
    %p86 = scmp.ne.s32.totalorder %s71, %s85
    %p87 = scmp.eq.s32.totalorder %s19, 0
    %p88 = por %p86, %p87
    %s90 = sadd.s32 %s89, 1
    %p93 = scmp.eq.s32.totalorder %s13, 1
    %p94 = scmp.ne.s32.totalorder %s89, %s91
    %p95 = scmp.eq.s32.totalorder %s13, 0
    %p96 = por %p94, %p95
    %p97 = scmp.ne.s32.totalorder %s89, %s91
    %p98 = scmp.eq.s32.totalorder %s18, 1
    %p99 = por %p97, %p98
    %p100 = scmp.ne.s32.totalorder %s91, %s92
    %p101 = scmp.eq.s32.totalorder %s18, 0
    %p102 = por %p100, %p101
    %p103 = scmp.ne.s32.totalorder %s91, %s92
    %p104 = scmp.eq.s32.totalorder %s19, 1
    %p105 = por %p103, %p104
    %p107 = scmp.ne.s32.totalorder %s92, %s106
    %p108 = scmp.eq.s32.totalorder %s19, 0
    %p109 = por %p107, %p108
    %s111 = sadd.s32 %s110, 1
    %p114 = scmp.eq.s32.totalorder %s13, 1
    %p115 = scmp.ne.s32.totalorder %s110, %s112
    %p116 = scmp.eq.s32.totalorder %s13, 0
    %p117 = por %p115, %p116
    %p118 = scmp.ne.s32.totalorder %s110, %s112
    %p119 = scmp.eq.s32.totalorder %s18, 1
    %p120 = por %p118, %p119
    %p121 = scmp.ne.s32.totalorder %s112, %s113
    %p122 = scmp.eq.s32.totalorder %s18, 0
    %p123 = por %p121, %p122
    %p124 = scmp.ne.s32.totalorder %s112, %s113
    %p125 = scmp.eq.s32.totalorder %s19, 1
    %p126 = por %p124, %p125
    %p128 = scmp.ne.s32.totalorder %s113, %s127
    %p129 = scmp.eq.s32.totalorder %s19, 0
    %p130 = por %p128, %p129
    %s132 = sadd.s32 %s131, 1
    %p135 = scmp.eq.s32.totalorder %s13, 1
    %p136 = scmp.ne.s32.totalorder %s131, %s133
    %p137 = scmp.eq.s32.totalorder %s13, 0
    %p138 = por %p136, %p137
    %p139 = scmp.ne.s32.totalorder %s131, %s133
    %p140 = scmp.eq.s32.totalorder %s18, 1
    %p141 = por %p139, %p140
    %p142 = scmp.ne.s32.totalorder %s133, %s134
    %p143 = scmp.eq.s32.totalorder %s18, 0
    %p144 = por %p142, %p143
    %p145 = scmp.ne.s32.totalorder %s133, %s134
    %p146 = scmp.eq.s32.totalorder %s19, 1
    %p147 = por %p145, %p146
    %p149 = scmp.ne.s32.totalorder %s134, %s148
    %p150 = scmp.eq.s32.totalorder %s19, 0
    %p151 = por %p149, %p150
    %s153 = sadd.s32 %s152, 1
    %p156 = scmp.eq.s32.totalorder %s13, 1
    %p157 = scmp.ne.s32.totalorder %s152, %s154
    %p158 = scmp.eq.s32.totalorder %s13, 0
    %p159 = por %p157, %p158
    %p160 = scmp.ne.s32.totalorder %s152, %s154
    %p161 = scmp.eq.s32.totalorder %s18, 1
    %p162 = por %p160, %p161
    %p163 = scmp.ne.s32.totalorder %s154, %s155
    %p164 = scmp.eq.s32.totalorder %s18, 0
    %p165 = por %p163, %p164
    %p166 = scmp.ne.s32.totalorder %s154, %s155
    %p167 = scmp.eq.s32.totalorder %s19, 1
    %p168 = por %p166, %p167
    %p170 = scmp.ne.s32.totalorder %s155, %s169
    %p171 = scmp.eq.s32.totalorder %s19, 0
    %p172 = por %p170, %p171
    %s173 = ssub.s32 %s13, %s20
    %p174 = scmp.eq.s32.totalorder %s173, 0
    %s176 = sadd.s32 %s175, 1
    %s177 = scalar_select %p174, %s175, %s176
    %p180 = pneg %p174
    %p181 = scmp.eq.s32.totalorder %s13, 1
    %p182 = por %p180, %p181
    %p183 = scmp.ne.s32.totalorder %s175, %s178
    %p184 = scmp.eq.s32.totalorder %s13, 0
    %p185 = por %p183, %p184
    %p186 = scmp.ne.s32.totalorder %s175, %s178
    %p187 = scmp.eq.s32.totalorder %s18, 1
    %p188 = por %p186, %p187
    %p189 = scmp.ne.s32.totalorder %s178, %s179
    %p190 = scmp.eq.s32.totalorder %s18, 0
    %p191 = por %p189, %p190
    %p192 = scmp.ne.s32.totalorder %s178, %s179
    %p193 = scmp.eq.s32.totalorder %s19, 1
    %p194 = por %p192, %p193
    %p196 = scmp.ne.s32.totalorder %s179, %s195
    %p197 = scmp.eq.s32.totalorder %s19, 0
    %p198 = por %p196, %p197
    %p199 = scmp.le.s32.totalorder 1, %s13
    %p200 = scmp.lt.s32.totalorder %s13, 3
    %p201 = pnand %p199, %p200
    %p202 = pneg %p201
    // Predicated region
    $region9: #{block_type3_forward.1} parent=5 // pred_check
      _
    $region10: #{block_type3_forward.1} parent=5 // pred_check_branch
      %204 = sbr.rel (%p201) target = $region12
    $region11: #{block_type3_forward.1} parent=5 // pred_region
      %s205 = ssub.s32 %s13, 1
      // Predicated region
      $region13: #{block_type3_forward.1} parent=11 // pred_check
        %p206 = pneg %p60
      $region14: #{block_type3_forward.1} parent=11 // pred_check_branch
        %208 = sbr.rel (%p206) target = $region16
      $region15: #{block_type3_forward.1} parent=11 // pred_region
        _
      $region16: #{block_type3_forward.1} parent=11 // pred_fallthru
        _
      // Predicated region
      $region17: #{block_type3_forward.1} parent=11 // pred_check
        %p209 = pneg %p81
      $region18: #{block_type3_forward.1} parent=11 // pred_check_branch
        %211 = sbr.rel (%p209) target = $region20
      $region19: #{block_type3_forward.1} parent=11 // pred_region
        _
      $region20: #{block_type3_forward.1} parent=11 // pred_fallthru
        _
      // Predicated region
      $region21: #{block_type3_forward.1} parent=11 // pred_check
        %p212 = pneg %p102
      $region22: #{block_type3_forward.1} parent=11 // pred_check_branch
        %214 = sbr.rel (%p212) target = $region24
      $region23: #{block_type3_forward.1} parent=11 // pred_region
        _
      $region24: #{block_type3_forward.1} parent=11 // pred_fallthru
        _
      // Predicated region
      $region25: #{block_type3_forward.1} parent=11 // pred_check
        %p215 = pneg %p123
      $region26: #{block_type3_forward.1} parent=11 // pred_check_branch
        %217 = sbr.rel (%p215) target = $region28
      $region27: #{block_type3_forward.1} parent=11 // pred_region
        _
      $region28: #{block_type3_forward.1} parent=11 // pred_fallthru
        _
      // Predicated region
      $region29: #{block_type3_forward.1} parent=11 // pred_check
        %p218 = pneg %p144
      $region30: #{block_type3_forward.1} parent=11 // pred_check_branch
        %220 = sbr.rel (%p218) target = $region32
      $region31: #{block_type3_forward.1} parent=11 // pred_region
        _
      $region32: #{block_type3_forward.1} parent=11 // pred_fallthru
        _
      // Predicated region
      $region33: #{block_type3_forward.1} parent=11 // pred_check
        %p221 = pneg %p165
      $region34: #{block_type3_forward.1} parent=11 // pred_check_branch
        %223 = sbr.rel (%p221) target = $region36
      $region35: #{block_type3_forward.1} parent=11 // pred_region
        _
      $region36: #{block_type3_forward.1} parent=11 // pred_fallthru
        _
    $region12: #{block_type3_forward.1} parent=5 // pred_fallthru
      _
    %p224 = scmp.lt.s32.totalorder %s13, 2
    // Predicated region
    $region37: #{block_type3_forward.1} parent=5 // pred_check
      %p225 = pneg %p224
    $region38: #{block_type3_forward.1} parent=5 // pred_check_branch
      %227 = sbr.rel (%p225) target = $region40
    $region39: #{block_type3_forward.1} parent=5 // pred_region
      // Predicated region
      $region41: #{block_type3_forward.1} parent=39 // pred_check
        %p228 = pneg %p33
      $region42: #{block_type3_forward.1} parent=39 // pred_check_branch
        %230 = sbr.rel (%p228) target = $region44
      $region43: #{block_type3_forward.1} parent=39 // pred_region
        %p231 = scmp.lt.s32.totalorder %s13, 1
        %s232 = scalar_select %p231, %s13, 1
        %s233 = smul.addr %s232, 2
        %s234 = smul.addr %s233, 4
        %s235 = scalar_lea.vmem %s0, %s234
      $region44: #{block_type3_forward.1} parent=39 // pred_fallthru
        _
    $region40: #{block_type3_forward.1} parent=5 // pred_fallthru
      _
    %p236 = scmp.le.s32.totalorder 1, %s13
    %p237 = scmp.lt.s32.totalorder %s13, 3
    %p238 = pnand %p236, %p237
    %p239 = pneg %p238
    // Predicated region
    $region45: #{block_type3_forward.1} parent=5 // pred_check
      _
    $region46: #{block_type3_forward.1} parent=5 // pred_check_branch
      %241 = sbr.rel (%p238) target = $region48
    $region47: #{block_type3_forward.1} parent=5 // pred_region
      %s242 = ssub.s32 %s13, 1
      %p243 = scmp.lt.s32.totalorder %s18, 1
      %s244 = scalar_select %p243, %s18, 1
      %s245 = smul.addr %s244, 2
      %s246 = smul.addr %s245, 4
      %s247 = scalar_lea.vmem %s0, %s246
      %p248 = pneg %p39
      %p249 = pneg %p36
      %p250 = pneg %p60
      %p251 = pneg %p57
      %p252 = pneg %p81
      %p253 = pneg %p78
      %p254 = pneg %p102
      %p255 = pneg %p99
      %p256 = pneg %p123
      %p257 = pneg %p120
      %p258 = pneg %p144
      %p259 = pneg %p141
      %p260 = pneg %p165
      %p261 = pneg %p162
      %p262 = pneg %p191
      %p263 = pneg %p188
      %p264 = scmp.lt.s32.totalorder %s18, 1
      %s265 = scalar_select %p264, %s18, 1
      %s266 = smul.addr %s265, 8
      %s267 = scalar_lea.vmem %s7, %s266
      %p268 = scmp.lt.s32.totalorder %s18, 1
      %s269 = scalar_select %p268, %s18, 1
      %s270 = smul.addr %s269, 2
      %s271 = smul.addr %s270, 4
      %s272 = scalar_lea.vmem %s0, %s271
      %p273 = scmp.lt.s32.totalorder %s18, 1
      %s274 = scalar_select %p273, %s18, 1
      %s275 = smul.addr %s274, 8
      %s276 = scalar_lea.vmem %s7, %s275
      %v278 = vld [vmem:[%s6] sm:$0xff]
      %v279 = vlaneseq
      %v280 = vand.u32 %v279, 127
      %v281 = vadd.s32 %v280, 128
      %v282 = vand.u32 %v280, 255
      %v283 = vand.u32 %v281, 255
      %v284 = vand.u32 %v282, 15
      %v285 = vand.u32 %v283, 15
      %vm286 = vcmp.lt.s32.totalorder %v282, 16
      %vm287 = vcmp.lt.s32.totalorder %v283, 16
      %vm288 = vcmp.ge.s32.totalorder %v282, 240
      %vm289 = vcmp.ge.s32.totalorder %v283, 240
      %vm290 = vcmp.eq.s32.totalorder %v284, 0
      %vm291 = vcmp.eq.s32.totalorder %v285, 0
      %vm292 = vcmp.eq.s32.totalorder %v284, 15
      %vm293 = vcmp.eq.s32.totalorder %v285, 15
      %v294 = vld [vmem:[%s272] sm:$0xff]
      %v296 = vcombine.high %v294, %v294
      %298 = vrot.lane.b32.xlu0 %v294, 16
      %v299 = vpop.permute.xlu0 %298
      %300 = vrot.lane.b32.xlu0 %v296, 16
      %v301 = vpop.permute.xlu0 %300
      %vm302 = vcmp.lt.s32.totalorder %v280, 16
      %v303 = vsel %vm302, %v299, %v301
      %v304 = vsel %vm302, %v301, %v299
      %v305 = vsel %vm286, 1, 0
      %v306 = vsel %vm287, 1, 0
      %vm307 = vcmp.eq.s32.totalorder %v305, 1
      %vm308 = vcmp.eq.s32.totalorder %v306, 1
      %v309 = vsel %vm307, %v294, %v304
      %v310 = vsel %vm308, %v296, %v303
      %311 = vrot.lane.b32.xlu0 %v309, 1
      %v312 = vpop.permute.xlu0 %311
      %313 = vrot.lane.b32.xlu0 %v310, 1
      %v314 = vpop.permute.xlu0 %313
      %vm315 = vcmp.lt.s32.totalorder %v280, 1
      %v316 = vsel %vm315, %v312, %v314
      %v317 = vsel %vm315, %v314, %v312
      %v318 = vsel %vm290, 1, 0
      %v319 = vsel %vm291, 1, 0
      %vm320 = vcmp.eq.s32.totalorder %v318, 1
      %vm321 = vcmp.eq.s32.totalorder %v319, 1
      %v322 = vsel %vm320, %v309, %v317
      %v323 = vsel %vm321, %v310, %v316
      %v324 = vld [vmem:[%s1] sm:$0xf]
      %v325 = vpack.c.bf16 %v322, %v322
      %v326 = vpack.c.bf16 %v323, %v323
      %s327 = scalar_lea.vmem %s1, 4
      %v328 = vld [vmem:[%s327] sm:$0xf]
      %v329 = vpack.c.bf16 %v309, %v309
      %v330 = vpack.c.bf16 %v310, %v310
      %vm331 = vcmask 31744
      %v333 = vsel %vm331, %v328, 0
      %vm335 = vcmask 1041408
      %v337 = vsel %vm335, %v329, 0
      %v340 = vsel %vm335, %v330, 0
      %342 = vmatprep.subr.bf16.mxu0 0
      %343 = vmatpush1.bf16.msra.mxu0 0
      %344 = vmatprep.subr.bf16.mxu0 0
      %345 = vmatpush1.bf16.msra.mxu0 0
      %346 = vmatprep.subr.bf16.mxu0 0
      %347 = vmatpush1.bf16.msra.mxu0 0
      %348 = vmatprep.subr.bf16.mxu0 0
      %349 = vmatpush1.bf16.msra.mxu0 0
      %350 = vmatprep.subr.bf16.mxu0 0
      %351 = vmatpush1.bf16.msra.mxu0 0
      %352 = vmatprep.subr.bf16.mxu0 0
      %353 = vmatpush1.bf16.msra.mxu0 0
      %354 = vmatprep.subr.bf16.mxu0 0
      %355 = vmatpush1.bf16.msra.mxu0 0
      %356 = vmatprep.subr.bf16.mxu0 %v340
      %357 = vmatpush1.bf16.msra.mxu0 %v337
      %358 = vmatprep.subr.bf16.mxu0 0
      %359 = vmatpush2.bf16.msra.mxu0 0
      %360 = vmatprep.subr.bf16.mxu0 0
      %361 = vmatpush2.bf16.msra.mxu0 0
      %362 = vmatprep.subr.bf16.mxu0 0
      %363 = vmatpush2.bf16.msra.mxu0 0
      %364 = vmatprep.subr.bf16.mxu0 0
      %365 = vmatpush2.bf16.msra.mxu0 0
      %366 = vmatprep.subr.bf16.mxu0 0
      %367 = vmatpush2.bf16.msra.mxu0 0
      %368 = vmatprep.subr.bf16.mxu0 0
      %369 = vmatpush2.bf16.msra.mxu0 0
      %370 = vmatprep.subr.bf16.mxu0 0
      %371 = vmatpush2.bf16.msra.mxu0 0
      %372 = vmatprep.subr.bf16.mxu0 0
      %373 = vmatpush2.bf16.msra.mxu0 0
      %374 = vmatprep.mubr.bf16.mxu0 0
      %375 = vmatmul.mubr.bf16.gmra.mxu0 %v333
      %v376 = vpop.f32.mrf.mxu0
      %v377 = vadd.f32 0.0, %v376
      %v378 = vpop.f32.mrf.mxu0
      %v379 = vadd.f32 0.0, %v378
      %v380 = vpop.f32.mrf.mxu0
      %v381 = vpop.f32.mrf.mxu0
      %382 = vdwg.mxu0
      %v384 = vsel %vm331, %v324, 0
      %v387 = vsel %vm335, %v325, 0
      %v390 = vsel %vm335, %v326, 0
      %392 = vmatprep.subr.bf16.mxu0 0
      %393 = vmatpush1.bf16.msra.mxu0 0
      %394 = vmatprep.subr.bf16.mxu0 0
      %395 = vmatpush1.bf16.msra.mxu0 0
      %396 = vmatprep.subr.bf16.mxu0 0
      %397 = vmatpush1.bf16.msra.mxu0 0
      %398 = vmatprep.subr.bf16.mxu0 0
      %399 = vmatpush1.bf16.msra.mxu0 0
      %400 = vmatprep.subr.bf16.mxu0 0
      %401 = vmatpush1.bf16.msra.mxu0 0
      %402 = vmatprep.subr.bf16.mxu0 0
      %403 = vmatpush1.bf16.msra.mxu0 0
      %404 = vmatprep.subr.bf16.mxu0 0
      %405 = vmatpush1.bf16.msra.mxu0 0
      %406 = vmatprep.subr.bf16.mxu0 %v390
      %407 = vmatpush1.bf16.msra.mxu0 %v387
      %408 = vmatprep.subr.bf16.mxu0 0
      %409 = vmatpush2.bf16.msra.mxu0 0
      %410 = vmatprep.subr.bf16.mxu0 0
      %411 = vmatpush2.bf16.msra.mxu0 0
      %412 = vmatprep.subr.bf16.mxu0 0
      %413 = vmatpush2.bf16.msra.mxu0 0
      %414 = vmatprep.subr.bf16.mxu0 0
      %415 = vmatpush2.bf16.msra.mxu0 0
      %416 = vmatprep.subr.bf16.mxu0 0
      %417 = vmatpush2.bf16.msra.mxu0 0
      %418 = vmatprep.subr.bf16.mxu0 0
      %419 = vmatpush2.bf16.msra.mxu0 0
      %420 = vmatprep.subr.bf16.mxu0 0
      %421 = vmatpush2.bf16.msra.mxu0 0
      %422 = vmatprep.subr.bf16.mxu0 0
      %423 = vmatpush2.bf16.msra.mxu0 0
      %424 = vmatprep.mubr.bf16.mxu0 0
      %425 = vmatmul.mubr.bf16.gmra.mxu0 %v384
      %v426 = vpop.f32.mrf.mxu0
      %v427 = vadd.f32 %v377, %v426
      %v428 = vpop.f32.mrf.mxu0
      %v429 = vadd.f32 %v379, %v428
      %v430 = vpop.f32.mrf.mxu0
      %v431 = vpop.f32.mrf.mxu0
      %432 = vdwg.mxu0
      %433 = vrot.lane.b32.xlu0 %v309, 127
      %v434 = vpop.permute.xlu0 %433
      %435 = vrot.lane.b32.xlu0 %v310, 127
      %v436 = vpop.permute.xlu0 %435
      %vm437 = vcmp.lt.s32.totalorder %v280, 127
      %v438 = vsel %vm437, %v434, %v436
      %v439 = vsel %vm437, %v436, %v434
      %v440 = vsel %vm292, 1, 0
      %v441 = vsel %vm293, 1, 0
      %vm442 = vcmp.eq.s32.totalorder %v440, 1
      %vm443 = vcmp.eq.s32.totalorder %v441, 1
      %v444 = vsel %vm442, %v309, %v438
      %v445 = vsel %vm443, %v310, %v439
      %s446 = scalar_lea.vmem %s1, 8
      %v447 = vld [vmem:[%s446] sm:$0xf]
      %v448 = vpack.c.bf16 %v444, %v444
      %v449 = vpack.c.bf16 %v445, %v445
      %v451 = vsel %vm331, %v447, 0
      %v454 = vsel %vm335, %v448, 0
      %v457 = vsel %vm335, %v449, 0
      %459 = vmatprep.subr.bf16.mxu0 0
      %460 = vmatpush1.bf16.msra.mxu0 0
      %461 = vmatprep.subr.bf16.mxu0 0
      %462 = vmatpush1.bf16.msra.mxu0 0
      %463 = vmatprep.subr.bf16.mxu0 0
      %464 = vmatpush1.bf16.msra.mxu0 0
      %465 = vmatprep.subr.bf16.mxu0 0
      %466 = vmatpush1.bf16.msra.mxu0 0
      %467 = vmatprep.subr.bf16.mxu0 0
      %468 = vmatpush1.bf16.msra.mxu0 0
      %469 = vmatprep.subr.bf16.mxu0 0
      %470 = vmatpush1.bf16.msra.mxu0 0
      %471 = vmatprep.subr.bf16.mxu0 0
      %472 = vmatpush1.bf16.msra.mxu0 0
      %473 = vmatprep.subr.bf16.mxu0 %v457
      %474 = vmatpush1.bf16.msra.mxu0 %v454
      %475 = vmatprep.subr.bf16.mxu0 0
      %476 = vmatpush2.bf16.msra.mxu0 0
      %477 = vmatprep.subr.bf16.mxu0 0
      %478 = vmatpush2.bf16.msra.mxu0 0
      %479 = vmatprep.subr.bf16.mxu0 0
      %480 = vmatpush2.bf16.msra.mxu0 0
      %481 = vmatprep.subr.bf16.mxu0 0
      %482 = vmatpush2.bf16.msra.mxu0 0
      %483 = vmatprep.subr.bf16.mxu0 0
      %484 = vmatpush2.bf16.msra.mxu0 0
      %485 = vmatprep.subr.bf16.mxu0 0
      %486 = vmatpush2.bf16.msra.mxu0 0
      %487 = vmatprep.subr.bf16.mxu0 0
      %488 = vmatpush2.bf16.msra.mxu0 0
      %489 = vmatprep.subr.bf16.mxu0 0
      %490 = vmatpush2.bf16.msra.mxu0 0
      %491 = vmatprep.mubr.bf16.mxu0 0
      %492 = vmatmul.mubr.bf16.gmra.mxu0 %v451
      %v493 = vpop.f32.mrf.mxu0
      %v494 = vadd.f32 0.0, %v493
      %v495 = vpop.f32.mrf.mxu0
      %v496 = vadd.f32 0.0, %v495
      %v497 = vpop.f32.mrf.mxu0
      %v498 = vpop.f32.mrf.mxu0
      %499 = vdwg.mxu0
      %v500 = vadd.f32 %v427, %v494
      %v501 = vadd.f32 %v429, %v496
      %502 = vrot.lane.b32.xlu0 %v294, 1
      %v503 = vpop.permute.xlu0 %502
      %504 = vrot.lane.b32.xlu0 %v296, 1
      %v505 = vpop.permute.xlu0 %504
      %v506 = vsel %vm315, %v503, %v505
      %v507 = vsel %vm315, %v505, %v503
      %v508 = vsel %vm320, %v294, %v507
      %v509 = vsel %vm321, %v296, %v506
      %s510 = scalar_lea.vmem %s1, 12
      %v511 = vld [vmem:[%s510] sm:$0xf]
      %v512 = vpack.c.bf16 %v508, %v508
      %v513 = vpack.c.bf16 %v509, %v509
      %v515 = vsel %vm331, %v511, 0
      %v518 = vsel %vm335, %v512, 0
      %v521 = vsel %vm335, %v513, 0
      %523 = vmatprep.subr.bf16.mxu0 0
      %524 = vmatpush1.bf16.msra.mxu0 0
      %525 = vmatprep.subr.bf16.mxu0 0
      %526 = vmatpush1.bf16.msra.mxu0 0
      %527 = vmatprep.subr.bf16.mxu0 0
      %528 = vmatpush1.bf16.msra.mxu0 0
      %529 = vmatprep.subr.bf16.mxu0 0
      %530 = vmatpush1.bf16.msra.mxu0 0
      %531 = vmatprep.subr.bf16.mxu0 0
      %532 = vmatpush1.bf16.msra.mxu0 0
      %533 = vmatprep.subr.bf16.mxu0 0
      %534 = vmatpush1.bf16.msra.mxu0 0
      %535 = vmatprep.subr.bf16.mxu0 0
      %536 = vmatpush1.bf16.msra.mxu0 0
      %537 = vmatprep.subr.bf16.mxu0 %v521
      %538 = vmatpush1.bf16.msra.mxu0 %v518
      %539 = vmatprep.subr.bf16.mxu0 0
      %540 = vmatpush2.bf16.msra.mxu0 0
      %541 = vmatprep.subr.bf16.mxu0 0
      %542 = vmatpush2.bf16.msra.mxu0 0
      %543 = vmatprep.subr.bf16.mxu0 0
      %544 = vmatpush2.bf16.msra.mxu0 0
      %545 = vmatprep.subr.bf16.mxu0 0
      %546 = vmatpush2.bf16.msra.mxu0 0
      %547 = vmatprep.subr.bf16.mxu0 0
      %548 = vmatpush2.bf16.msra.mxu0 0
      %549 = vmatprep.subr.bf16.mxu0 0
      %550 = vmatpush2.bf16.msra.mxu0 0
      %551 = vmatprep.subr.bf16.mxu0 0
      %552 = vmatpush2.bf16.msra.mxu0 0
      %553 = vmatprep.subr.bf16.mxu0 0
      %554 = vmatpush2.bf16.msra.mxu0 0
      %555 = vmatprep.mubr.bf16.mxu0 0
      %556 = vmatmul.mubr.bf16.gmra.mxu0 %v515
      %v557 = vpop.f32.mrf.mxu0
      %v558 = vadd.f32 0.0, %v557
      %v559 = vpop.f32.mrf.mxu0
      %v560 = vadd.f32 0.0, %v559
      %v561 = vpop.f32.mrf.mxu0
      %v562 = vpop.f32.mrf.mxu0
      %563 = vdwg.mxu0
      %v564 = vadd.f32 %v500, %v558
      %v565 = vadd.f32 %v501, %v560
      %s566 = scalar_lea.vmem %s1, 16
      %v567 = vld [vmem:[%s566] sm:$0xf]
      %v568 = vpack.c.bf16 %v294, %v294
      %v569 = vpack.c.bf16 %v296, %v296
      %v571 = vsel %vm331, %v567, 0
      %v574 = vsel %vm335, %v568, 0
      %v577 = vsel %vm335, %v569, 0
      %579 = vmatprep.subr.bf16.mxu0 0
      %580 = vmatpush1.bf16.msra.mxu0 0
      %581 = vmatprep.subr.bf16.mxu0 0
      %582 = vmatpush1.bf16.msra.mxu0 0
      %583 = vmatprep.subr.bf16.mxu0 0
      %584 = vmatpush1.bf16.msra.mxu0 0
      %585 = vmatprep.subr.bf16.mxu0 0
      %586 = vmatpush1.bf16.msra.mxu0 0
      %587 = vmatprep.subr.bf16.mxu0 0
      %588 = vmatpush1.bf16.msra.mxu0 0
      %589 = vmatprep.subr.bf16.mxu0 0
      %590 = vmatpush1.bf16.msra.mxu0 0
      %591 = vmatprep.subr.bf16.mxu0 0
      %592 = vmatpush1.bf16.msra.mxu0 0
      %593 = vmatprep.subr.bf16.mxu0 %v577
      %594 = vmatpush1.bf16.msra.mxu0 %v574
      %595 = vmatprep.subr.bf16.mxu0 0
      %596 = vmatpush2.bf16.msra.mxu0 0
      %597 = vmatprep.subr.bf16.mxu0 0
      %598 = vmatpush2.bf16.msra.mxu0 0
      %599 = vmatprep.subr.bf16.mxu0 0
      %600 = vmatpush2.bf16.msra.mxu0 0
      %601 = vmatprep.subr.bf16.mxu0 0
      %602 = vmatpush2.bf16.msra.mxu0 0
      %603 = vmatprep.subr.bf16.mxu0 0
      %604 = vmatpush2.bf16.msra.mxu0 0
      %605 = vmatprep.subr.bf16.mxu0 0
      %606 = vmatpush2.bf16.msra.mxu0 0
      %607 = vmatprep.subr.bf16.mxu0 0
      %608 = vmatpush2.bf16.msra.mxu0 0
      %609 = vmatprep.subr.bf16.mxu0 0
      %610 = vmatpush2.bf16.msra.mxu0 0
      %611 = vmatprep.mubr.bf16.mxu0 0
      %612 = vmatmul.mubr.bf16.gmra.mxu0 %v571
      %v613 = vpop.f32.mrf.mxu0
      %v614 = vadd.f32 0.0, %v613
      %v615 = vpop.f32.mrf.mxu0
      %v616 = vadd.f32 0.0, %v615
      %v617 = vpop.f32.mrf.mxu0
      %v618 = vpop.f32.mrf.mxu0
      %619 = vdwg.mxu0
      %v620 = vadd.f32 %v564, %v614
      %v621 = vadd.f32 %v565, %v616
      %622 = vrot.lane.b32.xlu0 %v294, 127
      %v623 = vpop.permute.xlu0 %622
      %624 = vrot.lane.b32.xlu0 %v296, 127
      %v625 = vpop.permute.xlu0 %624
      %v626 = vsel %vm437, %v623, %v625
      %v627 = vsel %vm437, %v625, %v623
      %v628 = vsel %vm442, %v294, %v626
      %v629 = vsel %vm443, %v296, %v627
      %s630 = scalar_lea.vmem %s1, 20
      %v631 = vld [vmem:[%s630] sm:$0xf]
      %v632 = vpack.c.bf16 %v628, %v628
      %v633 = vpack.c.bf16 %v629, %v629
      %v635 = vsel %vm331, %v631, 0
      %v638 = vsel %vm335, %v632, 0
      %v641 = vsel %vm335, %v633, 0
      %643 = vmatprep.subr.bf16.mxu0 0
      %644 = vmatpush1.bf16.msra.mxu0 0
      %645 = vmatprep.subr.bf16.mxu0 0
      %646 = vmatpush1.bf16.msra.mxu0 0
      %647 = vmatprep.subr.bf16.mxu0 0
      %648 = vmatpush1.bf16.msra.mxu0 0
      %649 = vmatprep.subr.bf16.mxu0 0
      %650 = vmatpush1.bf16.msra.mxu0 0
      %651 = vmatprep.subr.bf16.mxu0 0
      %652 = vmatpush1.bf16.msra.mxu0 0
      %653 = vmatprep.subr.bf16.mxu0 0
      %654 = vmatpush1.bf16.msra.mxu0 0
      %655 = vmatprep.subr.bf16.mxu0 0
      %656 = vmatpush1.bf16.msra.mxu0 0
      %657 = vmatprep.subr.bf16.mxu0 %v641
      %658 = vmatpush1.bf16.msra.mxu0 %v638
      %659 = vmatprep.subr.bf16.mxu0 0
      %660 = vmatpush2.bf16.msra.mxu0 0
      %661 = vmatprep.subr.bf16.mxu0 0
      %662 = vmatpush2.bf16.msra.mxu0 0
      %663 = vmatprep.subr.bf16.mxu0 0
      %664 = vmatpush2.bf16.msra.mxu0 0
      %665 = vmatprep.subr.bf16.mxu0 0
      %666 = vmatpush2.bf16.msra.mxu0 0
      %667 = vmatprep.subr.bf16.mxu0 0
      %668 = vmatpush2.bf16.msra.mxu0 0
      %669 = vmatprep.subr.bf16.mxu0 0
      %670 = vmatpush2.bf16.msra.mxu0 0
      %671 = vmatprep.subr.bf16.mxu0 0
      %672 = vmatpush2.bf16.msra.mxu0 0
      %673 = vmatprep.subr.bf16.mxu0 0
      %674 = vmatpush2.bf16.msra.mxu0 0
      %675 = vmatprep.mubr.bf16.mxu0 0
      %676 = vmatmul.mubr.bf16.gmra.mxu0 %v635
      %v677 = vpop.f32.mrf.mxu0
      %v678 = vadd.f32 0.0, %v677
      %v679 = vpop.f32.mrf.mxu0
      %v680 = vadd.f32 0.0, %v679
      %v681 = vpop.f32.mrf.mxu0
      %v682 = vpop.f32.mrf.mxu0
      %683 = vdwg.mxu0
      %v684 = vadd.f32 %v620, %v678
      %v685 = vadd.f32 %v621, %v680
      %686 = vrot.lane.b32.xlu0 %v294, 112
      %v687 = vpop.permute.xlu0 %686
      %688 = vrot.lane.b32.xlu0 %v296, 112
      %v689 = vpop.permute.xlu0 %688
      %vm690 = vcmp.lt.s32.totalorder %v280, 112
      %v691 = vsel %vm690, %v687, %v689
      %v692 = vsel %vm690, %v689, %v687
      %v693 = vsel %vm288, 1, 0
      %v694 = vsel %vm289, 1, 0
      %vm695 = vcmp.eq.s32.totalorder %v693, 1
      %vm696 = vcmp.eq.s32.totalorder %v694, 1
      %v697 = vsel %vm695, %v294, %v691
      %v698 = vsel %vm696, %v296, %v692
      %699 = vrot.lane.b32.xlu0 %v697, 1
      %v700 = vpop.permute.xlu0 %699
      %701 = vrot.lane.b32.xlu0 %v698, 1
      %v702 = vpop.permute.xlu0 %701
      %v703 = vsel %vm315, %v700, %v702
      %v704 = vsel %vm315, %v702, %v700
      %v705 = vsel %vm320, %v697, %v704
      %v706 = vsel %vm321, %v698, %v703
      %s707 = scalar_lea.vmem %s1, 24
      %v708 = vld [vmem:[%s707] sm:$0xf]
      %v709 = vpack.c.bf16 %v705, %v705
      %v710 = vpack.c.bf16 %v706, %v706
      %v712 = vsel %vm331, %v708, 0
      %v715 = vsel %vm335, %v709, 0
      %v718 = vsel %vm335, %v710, 0
      %720 = vmatprep.subr.bf16.mxu0 0
      %721 = vmatpush1.bf16.msra.mxu0 0
      %722 = vmatprep.subr.bf16.mxu0 0
      %723 = vmatpush1.bf16.msra.mxu0 0
      %724 = vmatprep.subr.bf16.mxu0 0
      %725 = vmatpush1.bf16.msra.mxu0 0
      %726 = vmatprep.subr.bf16.mxu0 0
      %727 = vmatpush1.bf16.msra.mxu0 0
      %728 = vmatprep.subr.bf16.mxu0 0
      %729 = vmatpush1.bf16.msra.mxu0 0
      %730 = vmatprep.subr.bf16.mxu0 0
      %731 = vmatpush1.bf16.msra.mxu0 0
      %732 = vmatprep.subr.bf16.mxu0 0
      %733 = vmatpush1.bf16.msra.mxu0 0
      %734 = vmatprep.subr.bf16.mxu0 %v718
      %735 = vmatpush1.bf16.msra.mxu0 %v715
      %736 = vmatprep.subr.bf16.mxu0 0
      %737 = vmatpush2.bf16.msra.mxu0 0
      %738 = vmatprep.subr.bf16.mxu0 0
      %739 = vmatpush2.bf16.msra.mxu0 0
      %740 = vmatprep.subr.bf16.mxu0 0
      %741 = vmatpush2.bf16.msra.mxu0 0
      %742 = vmatprep.subr.bf16.mxu0 0
      %743 = vmatpush2.bf16.msra.mxu0 0
      %744 = vmatprep.subr.bf16.mxu0 0
      %745 = vmatpush2.bf16.msra.mxu0 0
      %746 = vmatprep.subr.bf16.mxu0 0
      %747 = vmatpush2.bf16.msra.mxu0 0
      %748 = vmatprep.subr.bf16.mxu0 0
      %749 = vmatpush2.bf16.msra.mxu0 0
      %750 = vmatprep.subr.bf16.mxu0 0
      %751 = vmatpush2.bf16.msra.mxu0 0
      %752 = vmatprep.mubr.bf16.mxu0 0
      %753 = vmatmul.mubr.bf16.gmra.mxu0 %v712
      %v754 = vpop.f32.mrf.mxu0
      %v755 = vadd.f32 0.0, %v754
      %v756 = vpop.f32.mrf.mxu0
      %v757 = vadd.f32 0.0, %v756
      %v758 = vpop.f32.mrf.mxu0
      %v759 = vpop.f32.mrf.mxu0
      %760 = vdwg.mxu0
      %v761 = vadd.f32 %v684, %v755
      %v762 = vadd.f32 %v685, %v757
      %s763 = scalar_lea.vmem %s1, 28
      %v764 = vld [vmem:[%s763] sm:$0xf]
      %v765 = vpack.c.bf16 %v697, %v697
      %v766 = vpack.c.bf16 %v698, %v698
      %v768 = vsel %vm331, %v764, 0
      %v771 = vsel %vm335, %v765, 0
      %v774 = vsel %vm335, %v766, 0
      %776 = vmatprep.subr.bf16.mxu0 0
      %777 = vmatpush1.bf16.msra.mxu0 0
      %778 = vmatprep.subr.bf16.mxu0 0
      %779 = vmatpush1.bf16.msra.mxu0 0
      %780 = vmatprep.subr.bf16.mxu0 0
      %781 = vmatpush1.bf16.msra.mxu0 0
      %782 = vmatprep.subr.bf16.mxu0 0
      %783 = vmatpush1.bf16.msra.mxu0 0
      %784 = vmatprep.subr.bf16.mxu0 0
      %785 = vmatpush1.bf16.msra.mxu0 0
      %786 = vmatprep.subr.bf16.mxu0 0
      %787 = vmatpush1.bf16.msra.mxu0 0
      %788 = vmatprep.subr.bf16.mxu0 0
      %789 = vmatpush1.bf16.msra.mxu0 0
      %790 = vmatprep.subr.bf16.mxu0 %v774
      %791 = vmatpush1.bf16.msra.mxu0 %v771
      %792 = vmatprep.subr.bf16.mxu0 0
      %793 = vmatpush2.bf16.msra.mxu0 0
      %794 = vmatprep.subr.bf16.mxu0 0
      %795 = vmatpush2.bf16.msra.mxu0 0
      %796 = vmatprep.subr.bf16.mxu0 0
      %797 = vmatpush2.bf16.msra.mxu0 0
      %798 = vmatprep.subr.bf16.mxu0 0
      %799 = vmatpush2.bf16.msra.mxu0 0
      %800 = vmatprep.subr.bf16.mxu0 0
      %801 = vmatpush2.bf16.msra.mxu0 0
      %802 = vmatprep.subr.bf16.mxu0 0
      %803 = vmatpush2.bf16.msra.mxu0 0
      %804 = vmatprep.subr.bf16.mxu0 0
      %805 = vmatpush2.bf16.msra.mxu0 0
      %806 = vmatprep.subr.bf16.mxu0 0
      %807 = vmatpush2.bf16.msra.mxu0 0
      %808 = vmatprep.mubr.bf16.mxu0 0
      %809 = vmatmul.mubr.bf16.gmra.mxu0 %v768
      %v810 = vpop.f32.mrf.mxu0
      %v811 = vadd.f32 0.0, %v810
      %v812 = vpop.f32.mrf.mxu0
      %v813 = vadd.f32 0.0, %v812
      %v814 = vpop.f32.mrf.mxu0
      %v815 = vpop.f32.mrf.mxu0
      %816 = vdwg.mxu0
      %v817 = vadd.f32 %v761, %v811
      %v818 = vadd.f32 %v762, %v813
      %819 = vrot.lane.b32.xlu0 %v697, 127
      %v820 = vpop.permute.xlu0 %819
      %821 = vrot.lane.b32.xlu0 %v698, 127
      %v822 = vpop.permute.xlu0 %821
      %v823 = vsel %vm437, %v820, %v822
      %v824 = vsel %vm437, %v822, %v820
      %v825 = vsel %vm442, %v697, %v823
      %v826 = vsel %vm443, %v698, %v824
      %s827 = scalar_lea.vmem %s1, 32
      %v828 = vld [vmem:[%s827] sm:$0xf]
      %v829 = vpack.c.bf16 %v825, %v825
      %v830 = vpack.c.bf16 %v826, %v826
      %v832 = vsel %vm331, %v828, 0
      %v835 = vsel %vm335, %v829, 0
      %v838 = vsel %vm335, %v830, 0
      %840 = vmatprep.subr.bf16.mxu0 0
      %841 = vmatpush1.bf16.msra.mxu0 0
      %842 = vmatprep.subr.bf16.mxu0 0
      %843 = vmatpush1.bf16.msra.mxu0 0
      %844 = vmatprep.subr.bf16.mxu0 0
      %845 = vmatpush1.bf16.msra.mxu0 0
      %846 = vmatprep.subr.bf16.mxu0 0
      %847 = vmatpush1.bf16.msra.mxu0 0
      %848 = vmatprep.subr.bf16.mxu0 0
      %849 = vmatpush1.bf16.msra.mxu0 0
      %850 = vmatprep.subr.bf16.mxu0 0
      %851 = vmatpush1.bf16.msra.mxu0 0
      %852 = vmatprep.subr.bf16.mxu0 0
      %853 = vmatpush1.bf16.msra.mxu0 0
      %854 = vmatprep.subr.bf16.mxu0 %v838
      %855 = vmatpush1.bf16.msra.mxu0 %v835
      %856 = vmatprep.subr.bf16.mxu0 0
      %857 = vmatpush2.bf16.msra.mxu0 0
      %858 = vmatprep.subr.bf16.mxu0 0
      %859 = vmatpush2.bf16.msra.mxu0 0
      %860 = vmatprep.subr.bf16.mxu0 0
      %861 = vmatpush2.bf16.msra.mxu0 0
      %862 = vmatprep.subr.bf16.mxu0 0
      %863 = vmatpush2.bf16.msra.mxu0 0
      %864 = vmatprep.subr.bf16.mxu0 0
      %865 = vmatpush2.bf16.msra.mxu0 0
      %866 = vmatprep.subr.bf16.mxu0 0
      %867 = vmatpush2.bf16.msra.mxu0 0
      %868 = vmatprep.subr.bf16.mxu0 0
      %869 = vmatpush2.bf16.msra.mxu0 0
      %870 = vmatprep.subr.bf16.mxu0 0
      %871 = vmatpush2.bf16.msra.mxu0 0
      %872 = vmatprep.mubr.bf16.mxu0 0
      %873 = vmatmul.mubr.bf16.gmra.mxu0 %v832
      %v874 = vpop.f32.mrf.mxu0
      %v875 = vadd.f32 0.0, %v874
      %v876 = vpop.f32.mrf.mxu0
      %v877 = vadd.f32 0.0, %v876
      %v878 = vpop.f32.mrf.mxu0
      %v879 = vpop.f32.mrf.mxu0
      %880 = vdwg.mxu0
      %v881 = vadd.f32 %v817, %v875
      %v882 = vadd.f32 %v818, %v877
      %884 = vset.pattern.permute.xlu0 0
      %885 = vperm.xlu0 %884, %v278
      %v886 = vpop.permute.xlu0 %885
      %v888 = vadd.f32 %v881, %v886
      %v889 = vadd.f32 %v882, %v886
      %v890 = vmax.f32 %v888, 0.0
      %v891 = vmax.f32 %v889, 0.0
      %892 = vrot.lane.b32.xlu0 %v890, 16
      %v893 = vpop.permute.xlu0 %892
      %894 = vrot.lane.b32.xlu0 %v891, 16
      %v895 = vpop.permute.xlu0 %894
      %v896 = vsel %vm302, %v893, %v895
      %v897 = vsel %vm302, %v895, %v893
      %v898 = vsel %vm307, %v890, %v897
      %v899 = vsel %vm308, %v891, %v896
      %900 = vrot.lane.b32.xlu0 %v898, 1
      %v901 = vpop.permute.xlu0 %900
      %902 = vrot.lane.b32.xlu0 %v899, 1
      %v903 = vpop.permute.xlu0 %902
      %v904 = vsel %vm315, %v901, %v903
      %v905 = vsel %vm315, %v903, %v901
      %v906 = vsel %vm320, %v898, %v905
      %v907 = vsel %vm321, %v899, %v904
      %v908 = vld [vmem:[%s2] sm:$0xf]
      %v909 = vpack.c.bf16 %v906, %v906
      %v910 = vpack.c.bf16 %v907, %v907
      %s911 = scalar_lea.vmem %s2, 4
      %v912 = vld [vmem:[%s911] sm:$0xf]
      %v913 = vpack.c.bf16 %v898, %v898
      %v914 = vpack.c.bf16 %v899, %v899
      %vm915 = vcmask 64512
      %v917 = vsel %vm915, %v912, 0
      %vm919 = vcmask 1043456
      %v921 = vsel %vm919, %v913, 0
      %v924 = vsel %vm919, %v914, 0
      %926 = vmatprep.subr.bf16.mxu0 0
      %927 = vmatpush1.bf16.msra.mxu0 0
      %928 = vmatprep.subr.bf16.mxu0 0
      %929 = vmatpush1.bf16.msra.mxu0 0
      %930 = vmatprep.subr.bf16.mxu0 0
      %931 = vmatpush1.bf16.msra.mxu0 0
      %932 = vmatprep.subr.bf16.mxu0 0
      %933 = vmatpush1.bf16.msra.mxu0 0
      %934 = vmatprep.subr.bf16.mxu0 0
      %935 = vmatpush1.bf16.msra.mxu0 0
      %936 = vmatprep.subr.bf16.mxu0 0
      %937 = vmatpush1.bf16.msra.mxu0 0
      %938 = vmatprep.subr.bf16.mxu0 0
      %939 = vmatpush1.bf16.msra.mxu0 0
      %940 = vmatprep.subr.bf16.mxu0 %v924
      %941 = vmatpush1.bf16.msra.mxu0 %v921
      %942 = vmatprep.subr.bf16.mxu0 0
      %943 = vmatpush2.bf16.msra.mxu0 0
      %944 = vmatprep.subr.bf16.mxu0 0
      %945 = vmatpush2.bf16.msra.mxu0 0
      %946 = vmatprep.subr.bf16.mxu0 0
      %947 = vmatpush2.bf16.msra.mxu0 0
      %948 = vmatprep.subr.bf16.mxu0 0
      %949 = vmatpush2.bf16.msra.mxu0 0
      %950 = vmatprep.subr.bf16.mxu0 0
      %951 = vmatpush2.bf16.msra.mxu0 0
      %952 = vmatprep.subr.bf16.mxu0 0
      %953 = vmatpush2.bf16.msra.mxu0 0
      %954 = vmatprep.subr.bf16.mxu0 0
      %955 = vmatpush2.bf16.msra.mxu0 0
      %956 = vmatprep.subr.bf16.mxu0 0
      %957 = vmatpush2.bf16.msra.mxu0 0
      %958 = vmatprep.mubr.bf16.mxu0 0
      %959 = vmatmul.mubr.bf16.gmra.mxu0 %v917
      %v960 = vpop.f32.mrf.mxu0
      %v961 = vadd.f32 0.0, %v960
      %v962 = vpop.f32.mrf.mxu0
      %v963 = vadd.f32 0.0, %v962
      %v964 = vpop.f32.mrf.mxu0
      %v965 = vpop.f32.mrf.mxu0
      %966 = vdwg.mxu0
      %v968 = vsel %vm915, %v908, 0
      %v971 = vsel %vm919, %v909, 0
      %v974 = vsel %vm919, %v910, 0
      %976 = vmatprep.subr.bf16.mxu0 0
      %977 = vmatpush1.bf16.msra.mxu0 0
      %978 = vmatprep.subr.bf16.mxu0 0
      %979 = vmatpush1.bf16.msra.mxu0 0
      %980 = vmatprep.subr.bf16.mxu0 0
      %981 = vmatpush1.bf16.msra.mxu0 0
      %982 = vmatprep.subr.bf16.mxu0 0
      %983 = vmatpush1.bf16.msra.mxu0 0
      %984 = vmatprep.subr.bf16.mxu0 0
      %985 = vmatpush1.bf16.msra.mxu0 0
      %986 = vmatprep.subr.bf16.mxu0 0
      %987 = vmatpush1.bf16.msra.mxu0 0
      %988 = vmatprep.subr.bf16.mxu0 0
      %989 = vmatpush1.bf16.msra.mxu0 0
      %990 = vmatprep.subr.bf16.mxu0 %v974
      %991 = vmatpush1.bf16.msra.mxu0 %v971
      %992 = vmatprep.subr.bf16.mxu0 0
      %993 = vmatpush2.bf16.msra.mxu0 0
      %994 = vmatprep.subr.bf16.mxu0 0
      %995 = vmatpush2.bf16.msra.mxu0 0
      %996 = vmatprep.subr.bf16.mxu0 0
      %997 = vmatpush2.bf16.msra.mxu0 0
      %998 = vmatprep.subr.bf16.mxu0 0
      %999 = vmatpush2.bf16.msra.mxu0 0
      %1000 = vmatprep.subr.bf16.mxu0 0
      %1001 = vmatpush2.bf16.msra.mxu0 0
      %1002 = vmatprep.subr.bf16.mxu0 0
      %1003 = vmatpush2.bf16.msra.mxu0 0
      %1004 = vmatprep.subr.bf16.mxu0 0
      %1005 = vmatpush2.bf16.msra.mxu0 0
      %1006 = vmatprep.subr.bf16.mxu0 0
      %1007 = vmatpush2.bf16.msra.mxu0 0
      %1008 = vmatprep.mubr.bf16.mxu0 0
      %1009 = vmatmul.mubr.bf16.gmra.mxu0 %v968
      %v1010 = vpop.f32.mrf.mxu0
      %v1011 = vadd.f32 %v961, %v1010
      %v1012 = vpop.f32.mrf.mxu0
      %v1013 = vadd.f32 %v963, %v1012
      %v1014 = vpop.f32.mrf.mxu0
      %v1015 = vpop.f32.mrf.mxu0
      %1016 = vdwg.mxu0
      %1017 = vrot.lane.b32.xlu0 %v898, 127
      %v1018 = vpop.permute.xlu0 %1017
      %1019 = vrot.lane.b32.xlu0 %v899, 127
      %v1020 = vpop.permute.xlu0 %1019
      %v1021 = vsel %vm437, %v1018, %v1020
      %v1022 = vsel %vm437, %v1020, %v1018
      %v1023 = vsel %vm442, %v898, %v1021
      %v1024 = vsel %vm443, %v899, %v1022
      %s1025 = scalar_lea.vmem %s2, 8
      %v1026 = vld [vmem:[%s1025] sm:$0xf]
      %v1027 = vpack.c.bf16 %v1023, %v1023
      %v1028 = vpack.c.bf16 %v1024, %v1024
      %v1030 = vsel %vm915, %v1026, 0
      %v1033 = vsel %vm919, %v1027, 0
      %v1036 = vsel %vm919, %v1028, 0
      %1038 = vmatprep.subr.bf16.mxu0 0
      %1039 = vmatpush1.bf16.msra.mxu0 0
      %1040 = vmatprep.subr.bf16.mxu0 0
      %1041 = vmatpush1.bf16.msra.mxu0 0
      %1042 = vmatprep.subr.bf16.mxu0 0
      %1043 = vmatpush1.bf16.msra.mxu0 0
      %1044 = vmatprep.subr.bf16.mxu0 0
      %1045 = vmatpush1.bf16.msra.mxu0 0
      %1046 = vmatprep.subr.bf16.mxu0 0
      %1047 = vmatpush1.bf16.msra.mxu0 0
      %1048 = vmatprep.subr.bf16.mxu0 0
      %1049 = vmatpush1.bf16.msra.mxu0 0
      %1050 = vmatprep.subr.bf16.mxu0 0
      %1051 = vmatpush1.bf16.msra.mxu0 0
      %1052 = vmatprep.subr.bf16.mxu0 %v1036
      %1053 = vmatpush1.bf16.msra.mxu0 %v1033
      %1054 = vmatprep.subr.bf16.mxu0 0
      %1055 = vmatpush2.bf16.msra.mxu0 0
      %1056 = vmatprep.subr.bf16.mxu0 0
      %1057 = vmatpush2.bf16.msra.mxu0 0
      %1058 = vmatprep.subr.bf16.mxu0 0
      %1059 = vmatpush2.bf16.msra.mxu0 0
      %1060 = vmatprep.subr.bf16.mxu0 0
      %1061 = vmatpush2.bf16.msra.mxu0 0
      %1062 = vmatprep.subr.bf16.mxu0 0
      %1063 = vmatpush2.bf16.msra.mxu0 0
      %1064 = vmatprep.subr.bf16.mxu0 0
      %1065 = vmatpush2.bf16.msra.mxu0 0
      %1066 = vmatprep.subr.bf16.mxu0 0
      %1067 = vmatpush2.bf16.msra.mxu0 0
      %1068 = vmatprep.subr.bf16.mxu0 0
      %1069 = vmatpush2.bf16.msra.mxu0 0
      %1070 = vmatprep.mubr.bf16.mxu0 0
      %1071 = vmatmul.mubr.bf16.gmra.mxu0 %v1030
      %v1072 = vpop.f32.mrf.mxu0
      %v1073 = vadd.f32 0.0, %v1072
      %v1074 = vpop.f32.mrf.mxu0
      %v1075 = vadd.f32 0.0, %v1074
      %v1076 = vpop.f32.mrf.mxu0
      %v1077 = vpop.f32.mrf.mxu0
      %1078 = vdwg.mxu0
      %v1079 = vadd.f32 %v1011, %v1073
      %v1080 = vadd.f32 %v1013, %v1075
      %1081 = vrot.lane.b32.xlu0 %v890, 1
      %v1082 = vpop.permute.xlu0 %1081
      %1083 = vrot.lane.b32.xlu0 %v891, 1
      %v1084 = vpop.permute.xlu0 %1083
      %v1085 = vsel %vm315, %v1082, %v1084
      %v1086 = vsel %vm315, %v1084, %v1082
      %v1087 = vsel %vm320, %v890, %v1086
      %v1088 = vsel %vm321, %v891, %v1085
      %s1089 = scalar_lea.vmem %s2, 12
      %v1090 = vld [vmem:[%s1089] sm:$0xf]
      %v1091 = vpack.c.bf16 %v1087, %v1087
      %v1092 = vpack.c.bf16 %v1088, %v1088
      %v1094 = vsel %vm915, %v1090, 0
      %v1097 = vsel %vm919, %v1091, 0
      %v1100 = vsel %vm919, %v1092, 0
      %1102 = vmatprep.subr.bf16.mxu0 0
      %1103 = vmatpush1.bf16.msra.mxu0 0
      %1104 = vmatprep.subr.bf16.mxu0 0
      %1105 = vmatpush1.bf16.msra.mxu0 0
      %1106 = vmatprep.subr.bf16.mxu0 0
      %1107 = vmatpush1.bf16.msra.mxu0 0
      %1108 = vmatprep.subr.bf16.mxu0 0
      %1109 = vmatpush1.bf16.msra.mxu0 0
      %1110 = vmatprep.subr.bf16.mxu0 0
      %1111 = vmatpush1.bf16.msra.mxu0 0
      %1112 = vmatprep.subr.bf16.mxu0 0
      %1113 = vmatpush1.bf16.msra.mxu0 0
      %1114 = vmatprep.subr.bf16.mxu0 0
      %1115 = vmatpush1.bf16.msra.mxu0 0
      %1116 = vmatprep.subr.bf16.mxu0 %v1100
      %1117 = vmatpush1.bf16.msra.mxu0 %v1097
      %1118 = vmatprep.subr.bf16.mxu0 0
      %1119 = vmatpush2.bf16.msra.mxu0 0
      %1120 = vmatprep.subr.bf16.mxu0 0
      %1121 = vmatpush2.bf16.msra.mxu0 0
      %1122 = vmatprep.subr.bf16.mxu0 0
      %1123 = vmatpush2.bf16.msra.mxu0 0
      %1124 = vmatprep.subr.bf16.mxu0 0
      %1125 = vmatpush2.bf16.msra.mxu0 0
      %1126 = vmatprep.subr.bf16.mxu0 0
      %1127 = vmatpush2.bf16.msra.mxu0 0
      %1128 = vmatprep.subr.bf16.mxu0 0
      %1129 = vmatpush2.bf16.msra.mxu0 0
      %1130 = vmatprep.subr.bf16.mxu0 0
      %1131 = vmatpush2.bf16.msra.mxu0 0
      %1132 = vmatprep.subr.bf16.mxu0 0
      %1133 = vmatpush2.bf16.msra.mxu0 0
      %1134 = vmatprep.mubr.bf16.mxu0 0
      %1135 = vmatmul.mubr.bf16.gmra.mxu0 %v1094
      %v1136 = vpop.f32.mrf.mxu0
      %v1137 = vadd.f32 0.0, %v1136
      %v1138 = vpop.f32.mrf.mxu0
      %v1139 = vadd.f32 0.0, %v1138
      %v1140 = vpop.f32.mrf.mxu0
      %v1141 = vpop.f32.mrf.mxu0
      %1142 = vdwg.mxu0
      %v1143 = vadd.f32 %v1079, %v1137
      %v1144 = vadd.f32 %v1080, %v1139
      %s1145 = scalar_lea.vmem %s2, 16
      %v1146 = vld [vmem:[%s1145] sm:$0xf]
      %v1147 = vpack.c.bf16 %v890, %v890
      %v1148 = vpack.c.bf16 %v891, %v891
      %v1150 = vsel %vm915, %v1146, 0
      %v1153 = vsel %vm919, %v1147, 0
      %v1156 = vsel %vm919, %v1148, 0
      %1158 = vmatprep.subr.bf16.mxu0 0
      %1159 = vmatpush1.bf16.msra.mxu0 0
      %1160 = vmatprep.subr.bf16.mxu0 0
      %1161 = vmatpush1.bf16.msra.mxu0 0
      %1162 = vmatprep.subr.bf16.mxu0 0
      %1163 = vmatpush1.bf16.msra.mxu0 0
      %1164 = vmatprep.subr.bf16.mxu0 0
      %1165 = vmatpush1.bf16.msra.mxu0 0
      %1166 = vmatprep.subr.bf16.mxu0 0
      %1167 = vmatpush1.bf16.msra.mxu0 0
      %1168 = vmatprep.subr.bf16.mxu0 0
      %1169 = vmatpush1.bf16.msra.mxu0 0
      %1170 = vmatprep.subr.bf16.mxu0 0
      %1171 = vmatpush1.bf16.msra.mxu0 0
      %1172 = vmatprep.subr.bf16.mxu0 %v1156
      %1173 = vmatpush1.bf16.msra.mxu0 %v1153
      %1174 = vmatprep.subr.bf16.mxu0 0
      %1175 = vmatpush2.bf16.msra.mxu0 0
      %1176 = vmatprep.subr.bf16.mxu0 0
      %1177 = vmatpush2.bf16.msra.mxu0 0
      %1178 = vmatprep.subr.bf16.mxu0 0
      %1179 = vmatpush2.bf16.msra.mxu0 0
      %1180 = vmatprep.subr.bf16.mxu0 0
      %1181 = vmatpush2.bf16.msra.mxu0 0
      %1182 = vmatprep.subr.bf16.mxu0 0
      %1183 = vmatpush2.bf16.msra.mxu0 0
      %1184 = vmatprep.subr.bf16.mxu0 0
      %1185 = vmatpush2.bf16.msra.mxu0 0
      %1186 = vmatprep.subr.bf16.mxu0 0
      %1187 = vmatpush2.bf16.msra.mxu0 0
      %1188 = vmatprep.subr.bf16.mxu0 0
      %1189 = vmatpush2.bf16.msra.mxu0 0
      %1190 = vmatprep.mubr.bf16.mxu0 0
      %1191 = vmatmul.mubr.bf16.gmra.mxu0 %v1150
      %v1192 = vpop.f32.mrf.mxu0
      %v1193 = vadd.f32 0.0, %v1192
      %v1194 = vpop.f32.mrf.mxu0
      %v1195 = vadd.f32 0.0, %v1194
      %v1196 = vpop.f32.mrf.mxu0
      %v1197 = vpop.f32.mrf.mxu0
      %1198 = vdwg.mxu0
      %v1199 = vadd.f32 %v1143, %v1193
      %v1200 = vadd.f32 %v1144, %v1195
      %1201 = vrot.lane.b32.xlu0 %v890, 127
      %v1202 = vpop.permute.xlu0 %1201
      %1203 = vrot.lane.b32.xlu0 %v891, 127
      %v1204 = vpop.permute.xlu0 %1203
      %v1205 = vsel %vm437, %v1202, %v1204
      %v1206 = vsel %vm437, %v1204, %v1202
      %v1207 = vsel %vm442, %v890, %v1205
      %v1208 = vsel %vm443, %v891, %v1206
      %s1209 = scalar_lea.vmem %s2, 20
      %v1210 = vld [vmem:[%s1209] sm:$0xf]
      %v1211 = vpack.c.bf16 %v1207, %v1207
      %v1212 = vpack.c.bf16 %v1208, %v1208
      %v1214 = vsel %vm915, %v1210, 0
      %v1217 = vsel %vm919, %v1211, 0
      %v1220 = vsel %vm919, %v1212, 0
      %1222 = vmatprep.subr.bf16.mxu0 0
      %1223 = vmatpush1.bf16.msra.mxu0 0
      %1224 = vmatprep.subr.bf16.mxu0 0
      %1225 = vmatpush1.bf16.msra.mxu0 0
      %1226 = vmatprep.subr.bf16.mxu0 0
      %1227 = vmatpush1.bf16.msra.mxu0 0
      %1228 = vmatprep.subr.bf16.mxu0 0
      %1229 = vmatpush1.bf16.msra.mxu0 0
      %1230 = vmatprep.subr.bf16.mxu0 0
      %1231 = vmatpush1.bf16.msra.mxu0 0
      %1232 = vmatprep.subr.bf16.mxu0 0
      %1233 = vmatpush1.bf16.msra.mxu0 0
      %1234 = vmatprep.subr.bf16.mxu0 0
      %1235 = vmatpush1.bf16.msra.mxu0 0
      %1236 = vmatprep.subr.bf16.mxu0 %v1220
      %1237 = vmatpush1.bf16.msra.mxu0 %v1217
      %1238 = vmatprep.subr.bf16.mxu0 0
      %1239 = vmatpush2.bf16.msra.mxu0 0
      %1240 = vmatprep.subr.bf16.mxu0 0
      %1241 = vmatpush2.bf16.msra.mxu0 0
      %1242 = vmatprep.subr.bf16.mxu0 0
      %1243 = vmatpush2.bf16.msra.mxu0 0
      %1244 = vmatprep.subr.bf16.mxu0 0
      %1245 = vmatpush2.bf16.msra.mxu0 0
      %1246 = vmatprep.subr.bf16.mxu0 0
      %1247 = vmatpush2.bf16.msra.mxu0 0
      %1248 = vmatprep.subr.bf16.mxu0 0
      %1249 = vmatpush2.bf16.msra.mxu0 0
      %1250 = vmatprep.subr.bf16.mxu0 0
      %1251 = vmatpush2.bf16.msra.mxu0 0
      %1252 = vmatprep.subr.bf16.mxu0 0
      %1253 = vmatpush2.bf16.msra.mxu0 0
      %1254 = vmatprep.mubr.bf16.mxu0 0
      %1255 = vmatmul.mubr.bf16.gmra.mxu0 %v1214
      %v1256 = vpop.f32.mrf.mxu0
      %v1257 = vadd.f32 0.0, %v1256
      %v1258 = vpop.f32.mrf.mxu0
      %v1259 = vadd.f32 0.0, %v1258
      %v1260 = vpop.f32.mrf.mxu0
      %v1261 = vpop.f32.mrf.mxu0
      %1262 = vdwg.mxu0
      %v1263 = vadd.f32 %v1199, %v1257
      %v1264 = vadd.f32 %v1200, %v1259
      %1265 = vrot.lane.b32.xlu0 %v890, 112
      %v1266 = vpop.permute.xlu0 %1265
      %1267 = vrot.lane.b32.xlu0 %v891, 112
      %v1268 = vpop.permute.xlu0 %1267
      %v1269 = vsel %vm690, %v1266, %v1268
      %v1270 = vsel %vm690, %v1268, %v1266
      %v1271 = vsel %vm695, %v890, %v1269
      %v1272 = vsel %vm696, %v891, %v1270
      %1273 = vrot.lane.b32.xlu0 %v1271, 1
      %v1274 = vpop.permute.xlu0 %1273
      %1275 = vrot.lane.b32.xlu0 %v1272, 1
      %v1276 = vpop.permute.xlu0 %1275
      %v1277 = vsel %vm315, %v1274, %v1276
      %v1278 = vsel %vm315, %v1276, %v1274
      %v1279 = vsel %vm320, %v1271, %v1278
      %v1280 = vsel %vm321, %v1272, %v1277
      %s1281 = scalar_lea.vmem %s2, 24
      %v1282 = vld [vmem:[%s1281] sm:$0xf]
      %v1283 = vpack.c.bf16 %v1279, %v1279
      %v1284 = vpack.c.bf16 %v1280, %v1280
      %v1286 = vsel %vm915, %v1282, 0
      %v1289 = vsel %vm919, %v1283, 0
      %v1292 = vsel %vm919, %v1284, 0
      %1294 = vmatprep.subr.bf16.mxu0 0
      %1295 = vmatpush1.bf16.msra.mxu0 0
      %1296 = vmatprep.subr.bf16.mxu0 0
      %1297 = vmatpush1.bf16.msra.mxu0 0
      %1298 = vmatprep.subr.bf16.mxu0 0
      %1299 = vmatpush1.bf16.msra.mxu0 0
      %1300 = vmatprep.subr.bf16.mxu0 0
      %1301 = vmatpush1.bf16.msra.mxu0 0
      %1302 = vmatprep.subr.bf16.mxu0 0
      %1303 = vmatpush1.bf16.msra.mxu0 0
      %1304 = vmatprep.subr.bf16.mxu0 0
      %1305 = vmatpush1.bf16.msra.mxu0 0
      %1306 = vmatprep.subr.bf16.mxu0 0
      %1307 = vmatpush1.bf16.msra.mxu0 0
      %1308 = vmatprep.subr.bf16.mxu0 %v1292
      %1309 = vmatpush1.bf16.msra.mxu0 %v1289
      %1310 = vmatprep.subr.bf16.mxu0 0
      %1311 = vmatpush2.bf16.msra.mxu0 0
      %1312 = vmatprep.subr.bf16.mxu0 0
      %1313 = vmatpush2.bf16.msra.mxu0 0
      %1314 = vmatprep.subr.bf16.mxu0 0
      %1315 = vmatpush2.bf16.msra.mxu0 0
      %1316 = vmatprep.subr.bf16.mxu0 0
      %1317 = vmatpush2.bf16.msra.mxu0 0
      %1318 = vmatprep.subr.bf16.mxu0 0
      %1319 = vmatpush2.bf16.msra.mxu0 0
      %1320 = vmatprep.subr.bf16.mxu0 0
      %1321 = vmatpush2.bf16.msra.mxu0 0
      %1322 = vmatprep.subr.bf16.mxu0 0
      %1323 = vmatpush2.bf16.msra.mxu0 0
      %1324 = vmatprep.subr.bf16.mxu0 0
      %1325 = vmatpush2.bf16.msra.mxu0 0
      %1326 = vmatprep.mubr.bf16.mxu0 0
      %1327 = vmatmul.mubr.bf16.gmra.mxu0 %v1286
      %v1328 = vpop.f32.mrf.mxu0
      %v1329 = vadd.f32 0.0, %v1328
      %v1330 = vpop.f32.mrf.mxu0
      %v1331 = vadd.f32 0.0, %v1330
      %v1332 = vpop.f32.mrf.mxu0
      %v1333 = vpop.f32.mrf.mxu0
      %1334 = vdwg.mxu0
      %v1335 = vadd.f32 %v1263, %v1329
      %v1336 = vadd.f32 %v1264, %v1331
      %s1337 = scalar_lea.vmem %s2, 28
      %v1338 = vld [vmem:[%s1337] sm:$0xf]
      %v1339 = vpack.c.bf16 %v1271, %v1271
      %v1340 = vpack.c.bf16 %v1272, %v1272
      %v1342 = vsel %vm915, %v1338, 0
      %v1345 = vsel %vm919, %v1339, 0
      %v1348 = vsel %vm919, %v1340, 0
      %1350 = vmatprep.subr.bf16.mxu0 0
      %1351 = vmatpush1.bf16.msra.mxu0 0
      %1352 = vmatprep.subr.bf16.mxu0 0
      %1353 = vmatpush1.bf16.msra.mxu0 0
      %1354 = vmatprep.subr.bf16.mxu0 0
      %1355 = vmatpush1.bf16.msra.mxu0 0
      %1356 = vmatprep.subr.bf16.mxu0 0
      %1357 = vmatpush1.bf16.msra.mxu0 0
      %1358 = vmatprep.subr.bf16.mxu0 0
      %1359 = vmatpush1.bf16.msra.mxu0 0
      %1360 = vmatprep.subr.bf16.mxu0 0
      %1361 = vmatpush1.bf16.msra.mxu0 0
      %1362 = vmatprep.subr.bf16.mxu0 0
      %1363 = vmatpush1.bf16.msra.mxu0 0
      %1364 = vmatprep.subr.bf16.mxu0 %v1348
      %1365 = vmatpush1.bf16.msra.mxu0 %v1345
      %1366 = vmatprep.subr.bf16.mxu0 0
      %1367 = vmatpush2.bf16.msra.mxu0 0
      %1368 = vmatprep.subr.bf16.mxu0 0
      %1369 = vmatpush2.bf16.msra.mxu0 0
      %1370 = vmatprep.subr.bf16.mxu0 0
      %1371 = vmatpush2.bf16.msra.mxu0 0
      %1372 = vmatprep.subr.bf16.mxu0 0
      %1373 = vmatpush2.bf16.msra.mxu0 0
      %1374 = vmatprep.subr.bf16.mxu0 0
      %1375 = vmatpush2.bf16.msra.mxu0 0
      %1376 = vmatprep.subr.bf16.mxu0 0
      %1377 = vmatpush2.bf16.msra.mxu0 0
      %1378 = vmatprep.subr.bf16.mxu0 0
      %1379 = vmatpush2.bf16.msra.mxu0 0
      %1380 = vmatprep.subr.bf16.mxu0 0
      %1381 = vmatpush2.bf16.msra.mxu0 0
      %1382 = vmatprep.mubr.bf16.mxu0 0
      %1383 = vmatmul.mubr.bf16.gmra.mxu0 %v1342
      %v1384 = vpop.f32.mrf.mxu0
      %v1385 = vadd.f32 0.0, %v1384
      %v1386 = vpop.f32.mrf.mxu0
      %v1387 = vadd.f32 0.0, %v1386
      %v1388 = vpop.f32.mrf.mxu0
      %v1389 = vpop.f32.mrf.mxu0
      %1390 = vdwg.mxu0
      %v1391 = vadd.f32 %v1335, %v1385
      %v1392 = vadd.f32 %v1336, %v1387
      %1393 = vrot.lane.b32.xlu0 %v1271, 127
      %v1394 = vpop.permute.xlu0 %1393
      %1395 = vrot.lane.b32.xlu0 %v1272, 127
      %v1396 = vpop.permute.xlu0 %1395
      %v1397 = vsel %vm437, %v1394, %v1396
      %v1398 = vsel %vm437, %v1396, %v1394
      %v1399 = vsel %vm442, %v1271, %v1397
      %v1400 = vsel %vm443, %v1272, %v1398
      %s1401 = scalar_lea.vmem %s2, 32
      %v1402 = vld [vmem:[%s1401] sm:$0xf]
      %v1403 = vpack.c.bf16 %v1399, %v1399
      %v1404 = vpack.c.bf16 %v1400, %v1400
      %v1406 = vsel %vm915, %v1402, 0
      %v1409 = vsel %vm919, %v1403, 0
      %v1412 = vsel %vm919, %v1404, 0
      %1414 = vmatprep.subr.bf16.mxu0 0
      %1415 = vmatpush1.bf16.msra.mxu0 0
      %1416 = vmatprep.subr.bf16.mxu0 0
      %1417 = vmatpush1.bf16.msra.mxu0 0
      %1418 = vmatprep.subr.bf16.mxu0 0
      %1419 = vmatpush1.bf16.msra.mxu0 0
      %1420 = vmatprep.subr.bf16.mxu0 0
      %1421 = vmatpush1.bf16.msra.mxu0 0
      %1422 = vmatprep.subr.bf16.mxu0 0
      %1423 = vmatpush1.bf16.msra.mxu0 0
      %1424 = vmatprep.subr.bf16.mxu0 0
      %1425 = vmatpush1.bf16.msra.mxu0 0
      %1426 = vmatprep.subr.bf16.mxu0 0
      %1427 = vmatpush1.bf16.msra.mxu0 0
      %1428 = vmatprep.subr.bf16.mxu0 %v1412
      %1429 = vmatpush1.bf16.msra.mxu0 %v1409
      %1430 = vmatprep.subr.bf16.mxu0 0
      %1431 = vmatpush2.bf16.msra.mxu0 0
      %1432 = vmatprep.subr.bf16.mxu0 0
      %1433 = vmatpush2.bf16.msra.mxu0 0
      %1434 = vmatprep.subr.bf16.mxu0 0
      %1435 = vmatpush2.bf16.msra.mxu0 0
      %1436 = vmatprep.subr.bf16.mxu0 0
      %1437 = vmatpush2.bf16.msra.mxu0 0
      %1438 = vmatprep.subr.bf16.mxu0 0
      %1439 = vmatpush2.bf16.msra.mxu0 0
      %1440 = vmatprep.subr.bf16.mxu0 0
      %1441 = vmatpush2.bf16.msra.mxu0 0
      %1442 = vmatprep.subr.bf16.mxu0 0
      %1443 = vmatpush2.bf16.msra.mxu0 0
      %1444 = vmatprep.subr.bf16.mxu0 0
      %1445 = vmatpush2.bf16.msra.mxu0 0
      %1446 = vmatprep.mubr.bf16.mxu0 0
      %1447 = vmatmul.mubr.bf16.gmra.mxu0 %v1406
      %v1448 = vpop.f32.mrf.mxu0
      %v1449 = vadd.f32 0.0, %v1448
      %v1450 = vpop.f32.mrf.mxu0
      %v1451 = vadd.f32 0.0, %v1450
      %v1452 = vpop.f32.mrf.mxu0
      %v1453 = vpop.f32.mrf.mxu0
      %1454 = vdwg.mxu0
      %v1455 = vadd.f32 %v1391, %v1449
      %v1456 = vadd.f32 %v1392, %v1451
      %1457 = vset.pattern.permute.xlu0 1
      %1458 = vperm.xlu0 %1457, %v278
      %v1459 = vpop.permute.xlu0 %1458
      %v1461 = vadd.f32 %v1455, %v1459
      %v1462 = vadd.f32 %v1456, %v1459
      %v1463 = vpack.c.bf16 %v1461, %v1461
      %v1464 = vpack.c.bf16 %v1462, %v1462
      %v1465 = vld [vmem:[%s4] sm:$0xf]
      %v1466 = vld [vmem:[%s4 + $0x4] sm:$0xf]
      %v1467 = vld [vmem:[%s4 + $0x8] sm:$0xf]
      %v1468 = vld [vmem:[%s4 + $0xc] sm:$0xf]
      %v1469 = vld [vmem:[%s4 + $0x10] sm:$0xf]
      %v1470 = vld [vmem:[%s4 + $0x14] sm:$0xf]
      %v1471 = vld [vmem:[%s4 + $0x18] sm:$0xf]
      %v1472 = vld [vmem:[%s4 + $0x1c] sm:$0xf]
      %v1473 = vld [vmem:[%s4 + $0x20] sm:$0xf]
      %v1474 = vld [vmem:[%s4 + $0x24] sm:$0xf]
      %v1475 = vld [vmem:[%s4 + $0x28] sm:$0xf]
      %v1476 = vld [vmem:[%s4 + $0x2c] sm:$0xf]
      %v1477 = vld [vmem:[%s4 + $0x30] sm:$0xf]
      %v1478 = vld [vmem:[%s4 + $0x34] sm:$0xf]
      %v1479 = vld [vmem:[%s4 + $0x38] sm:$0xf]
      %v1480 = vld [vmem:[%s4 + $0x3c] sm:$0xf]
      %v1481 = vld [vmem:[%s4 + $0x40] sm:$0xf]
      %v1482 = vld [vmem:[%s4 + $0x44] sm:$0xf]
      %v1483 = vld [vmem:[%s4 + $0x48] sm:$0xf]
      %v1484 = vld [vmem:[%s4 + $0x4c] sm:$0xf]
      %v1485 = vld [vmem:[%s4 + $0x50] sm:$0xf]
      %v1486 = vld [vmem:[%s4 + $0x54] sm:$0xf]
      %v1487 = vld [vmem:[%s4 + $0x58] sm:$0xf]
      %v1488 = vld [vmem:[%s4 + $0x5c] sm:$0xf]
      %v1489 = vld [vmem:[%s4 + $0x60] sm:$0xf]
      %v1490 = vld [vmem:[%s4 + $0x64] sm:$0xf]
      %v1491 = vld [vmem:[%s4 + $0x68] sm:$0xf]
      %v1492 = vld [vmem:[%s4 + $0x6c] sm:$0xf]
      %v1493 = vld [vmem:[%s4 + $0x70] sm:$0xf]
      %v1494 = vld [vmem:[%s4 + $0x74] sm:$0xf]
      %v1495 = vld [vmem:[%s4 + $0x78] sm:$0xf]
      %v1496 = vld [vmem:[%s4 + $0x7c] sm:$0xf]
      %v1497 = vld [vmem:[%s5] sm:$0xf]
      %v1498 = vld [vmem:[%s5 + $0x4] sm:$0xf]
      %v1499 = vld [vmem:[%s5 + $0x8] sm:$0xf]
      %v1500 = vld [vmem:[%s5 + $0xc] sm:$0xf]
      %v1501 = vld [vmem:[%s5 + $0x10] sm:$0xf]
      %v1502 = vld [vmem:[%s5 + $0x14] sm:$0xf]
      %v1503 = vld [vmem:[%s5 + $0x18] sm:$0xf]
      %v1504 = vld [vmem:[%s5 + $0x1c] sm:$0xf]
      %v1505 = vld [vmem:[%s5 + $0x20] sm:$0xf]
      %v1506 = vld [vmem:[%s5 + $0x24] sm:$0xf]
      %v1507 = vld [vmem:[%s5 + $0x28] sm:$0xf]
      %v1508 = vld [vmem:[%s5 + $0x2c] sm:$0xf]
      %v1509 = vld [vmem:[%s5 + $0x30] sm:$0xf]
      %v1510 = vld [vmem:[%s5 + $0x34] sm:$0xf]
      %v1511 = vld [vmem:[%s5 + $0x38] sm:$0xf]
      %v1512 = vld [vmem:[%s5 + $0x3c] sm:$0xf]
      %v1513 = vld [vmem:[%s5 + $0x40] sm:$0xf]
      %v1514 = vld [vmem:[%s5 + $0x44] sm:$0xf]
      %v1515 = vld [vmem:[%s5 + $0x48] sm:$0xf]
      %v1516 = vld [vmem:[%s5 + $0x4c] sm:$0xf]
      %v1517 = vld [vmem:[%s5 + $0x50] sm:$0xf]
      %v1518 = vld [vmem:[%s5 + $0x54] sm:$0xf]
      %v1519 = vld [vmem:[%s5 + $0x58] sm:$0xf]
      %v1520 = vld [vmem:[%s5 + $0x5c] sm:$0xf]
      %v1521 = vld [vmem:[%s5 + $0x60] sm:$0xf]
      %v1522 = vld [vmem:[%s5 + $0x64] sm:$0xf]
      %v1523 = vld [vmem:[%s5 + $0x68] sm:$0xf]
      %v1524 = vld [vmem:[%s5 + $0x6c] sm:$0xf]
      %v1525 = vld [vmem:[%s5 + $0x70] sm:$0xf]
      %v1526 = vld [vmem:[%s5 + $0x74] sm:$0xf]
      %v1527 = vld [vmem:[%s5 + $0x78] sm:$0xf]
      %v1528 = vld [vmem:[%s5 + $0x7c] sm:$0xf]
      %v1529 = vld [vmem:[%s3] sm:$0xf]
      %v1562 = vunpack.c.l.b16 %v1465
      %v1563 = vunpack.c.l.b16 %v1466
      %v1564 = vunpack.c.l.b16 %v1467
      %v1565 = vunpack.c.l.b16 %v1468
      %v1566 = vunpack.c.l.b16 %v1469
      %v1567 = vunpack.c.l.b16 %v1470
      %v1568 = vunpack.c.l.b16 %v1471
      %v1569 = vunpack.c.l.b16 %v1472
      %v1570 = vunpack.c.l.b16 %v1473
      %v1571 = vunpack.c.l.b16 %v1474
      %v1572 = vunpack.c.l.b16 %v1475
      %v1573 = vunpack.c.l.b16 %v1476
      %v1574 = vunpack.c.l.b16 %v1477
      %v1575 = vunpack.c.l.b16 %v1478
      %v1576 = vunpack.c.l.b16 %v1479
      %v1577 = vunpack.c.l.b16 %v1480
      %v1578 = vunpack.c.l.b16 %v1481
      %v1579 = vunpack.c.l.b16 %v1482
      %v1580 = vunpack.c.l.b16 %v1483
      %v1581 = vunpack.c.l.b16 %v1484
      %v1582 = vunpack.c.l.b16 %v1485
      %v1583 = vunpack.c.l.b16 %v1486
      %v1584 = vunpack.c.l.b16 %v1487
      %v1585 = vunpack.c.l.b16 %v1488
      %v1586 = vunpack.c.l.b16 %v1489
      %v1587 = vunpack.c.l.b16 %v1490
      %v1588 = vunpack.c.l.b16 %v1491
      %v1589 = vunpack.c.l.b16 %v1492
      %v1590 = vunpack.c.l.b16 %v1493
      %v1591 = vunpack.c.l.b16 %v1494
      %v1592 = vunpack.c.l.b16 %v1495
      %v1593 = vunpack.c.l.b16 %v1496
      %v1594 = vpack.c.b16 %v1563, %v1562
      %v1595 = vpack.c.b16 %v1565, %v1564
      %v1596 = vpack.c.b16 %v1567, %v1566
      %v1597 = vpack.c.b16 %v1569, %v1568
      %v1598 = vpack.c.b16 %v1571, %v1570
      %v1599 = vpack.c.b16 %v1573, %v1572
      %v1600 = vpack.c.b16 %v1575, %v1574
      %v1601 = vpack.c.b16 %v1577, %v1576
      %v1602 = vpack.c.b16 %v1579, %v1578
      %v1603 = vpack.c.b16 %v1581, %v1580
      %v1604 = vpack.c.b16 %v1583, %v1582
      %v1605 = vpack.c.b16 %v1585, %v1584
      %v1606 = vpack.c.b16 %v1587, %v1586
      %v1607 = vpack.c.b16 %v1589, %v1588
      %v1608 = vpack.c.b16 %v1591, %v1590
      %v1609 = vpack.c.b16 %v1593, %v1592
      %1626 = vmatprep.subr.bf16.mxu0 0
      %1627 = vmatpush1.bf16.msra.mxu0 %v1601
      %1628 = vmatprep.subr.bf16.mxu0 0
      %1629 = vmatpush1.bf16.msra.mxu0 %v1600
      %1630 = vmatprep.subr.bf16.mxu0 0
      %1631 = vmatpush1.bf16.msra.mxu0 %v1599
      %1632 = vmatprep.subr.bf16.mxu0 0
      %1633 = vmatpush1.bf16.msra.mxu0 %v1598
      %1634 = vmatprep.subr.bf16.mxu0 0
      %1635 = vmatpush1.bf16.msra.mxu0 %v1597
      %1636 = vmatprep.subr.bf16.mxu0 0
      %1637 = vmatpush1.bf16.msra.mxu0 %v1596
      %1638 = vmatprep.subr.bf16.mxu0 0
      %1639 = vmatpush1.bf16.msra.mxu0 %v1595
      %1640 = vmatprep.subr.bf16.mxu0 0
      %1641 = vmatpush1.bf16.msra.mxu0 %v1594
      %1642 = vmatprep.subr.bf16.mxu0 0
      %1643 = vmatpush2.bf16.msra.mxu0 %v1609
      %1644 = vmatprep.subr.bf16.mxu0 0
      %1645 = vmatpush2.bf16.msra.mxu0 %v1608
      %1646 = vmatprep.subr.bf16.mxu0 0
      %1647 = vmatpush2.bf16.msra.mxu0 %v1607
      %1648 = vmatprep.subr.bf16.mxu0 0
      %1649 = vmatpush2.bf16.msra.mxu0 %v1606
      %1650 = vmatprep.subr.bf16.mxu0 0
      %1651 = vmatpush2.bf16.msra.mxu0 %v1605
      %1652 = vmatprep.subr.bf16.mxu0 0
      %1653 = vmatpush2.bf16.msra.mxu0 %v1604
      %1654 = vmatprep.subr.bf16.mxu0 0
      %1655 = vmatpush2.bf16.msra.mxu0 %v1603
      %1656 = vmatprep.subr.bf16.mxu0 0
      %1657 = vmatpush2.bf16.msra.mxu0 %v1602
      %1658 = vmatprep.mubr.bf16.mxu0 %v1464
      %1659 = vmatmul.mubr.bf16.gmra.mxu0 %v1463
      %v1660 = vpop.f32.mrf.mxu0
      %v1661 = vadd.f32 0.0, %v1660
      %v1662 = vpop.f32.mrf.mxu0
      %v1663 = vpop.f32.mrf.mxu0
      %v1664 = vpop.f32.mrf.mxu0
      %1665 = vdwg.mxu0
      %v1666 = vmul.f32 %v1661, 0.11111111
      %v1699 = vunpack.c.l.b16 %v1497
      %v1700 = vunpack.c.l.b16 %v1498
      %v1701 = vunpack.c.l.b16 %v1499
      %v1702 = vunpack.c.l.b16 %v1500
      %v1703 = vunpack.c.l.b16 %v1501
      %v1704 = vunpack.c.l.b16 %v1502
      %v1705 = vunpack.c.l.b16 %v1503
      %v1706 = vunpack.c.l.b16 %v1504
      %v1707 = vunpack.c.l.b16 %v1505
      %v1708 = vunpack.c.l.b16 %v1506
      %v1709 = vunpack.c.l.b16 %v1507
      %v1710 = vunpack.c.l.b16 %v1508
      %v1711 = vunpack.c.l.b16 %v1509
      %v1712 = vunpack.c.l.b16 %v1510
      %v1713 = vunpack.c.l.b16 %v1511
      %v1714 = vunpack.c.l.b16 %v1512
      %v1715 = vunpack.c.l.b16 %v1513
      %v1716 = vunpack.c.l.b16 %v1514
      %v1717 = vunpack.c.l.b16 %v1515
      %v1718 = vunpack.c.l.b16 %v1516
      %v1719 = vunpack.c.l.b16 %v1517
      %v1720 = vunpack.c.l.b16 %v1518
      %v1721 = vunpack.c.l.b16 %v1519
      %v1722 = vunpack.c.l.b16 %v1520
      %v1723 = vunpack.c.l.b16 %v1521
      %v1724 = vunpack.c.l.b16 %v1522
      %v1725 = vunpack.c.l.b16 %v1523
      %v1726 = vunpack.c.l.b16 %v1524
      %v1727 = vunpack.c.l.b16 %v1525
      %v1728 = vunpack.c.l.b16 %v1526
      %v1729 = vunpack.c.l.b16 %v1527
      %v1730 = vunpack.c.l.b16 %v1528
      %v1731 = vpack.c.b16 %v1700, %v1699
      %v1732 = vpack.c.b16 %v1702, %v1701
      %v1733 = vpack.c.b16 %v1704, %v1703
      %v1734 = vpack.c.b16 %v1706, %v1705
      %v1735 = vpack.c.b16 %v1708, %v1707
      %v1736 = vpack.c.b16 %v1710, %v1709
      %v1737 = vpack.c.b16 %v1712, %v1711
      %v1738 = vpack.c.b16 %v1714, %v1713
      %v1739 = vpack.c.b16 %v1716, %v1715
      %v1740 = vpack.c.b16 %v1718, %v1717
      %v1741 = vpack.c.b16 %v1720, %v1719
      %v1742 = vpack.c.b16 %v1722, %v1721
      %v1743 = vpack.c.b16 %v1724, %v1723
      %v1744 = vpack.c.b16 %v1726, %v1725
      %v1745 = vpack.c.b16 %v1728, %v1727
      %v1746 = vpack.c.b16 %v1730, %v1729
      %1763 = vmatprep.subr.bf16.mxu0 0
      %1764 = vmatpush1.bf16.msra.mxu0 %v1738
      %1765 = vmatprep.subr.bf16.mxu0 0
      %1766 = vmatpush1.bf16.msra.mxu0 %v1737
      %1767 = vmatprep.subr.bf16.mxu0 0
      %1768 = vmatpush1.bf16.msra.mxu0 %v1736
      %1769 = vmatprep.subr.bf16.mxu0 0
      %1770 = vmatpush1.bf16.msra.mxu0 %v1735
      %1771 = vmatprep.subr.bf16.mxu0 0
      %1772 = vmatpush1.bf16.msra.mxu0 %v1734
      %1773 = vmatprep.subr.bf16.mxu0 0
      %1774 = vmatpush1.bf16.msra.mxu0 %v1733
      %1775 = vmatprep.subr.bf16.mxu0 0
      %1776 = vmatpush1.bf16.msra.mxu0 %v1732
      %1777 = vmatprep.subr.bf16.mxu0 0
      %1778 = vmatpush1.bf16.msra.mxu0 %v1731
      %1779 = vmatprep.subr.bf16.mxu0 0
      %1780 = vmatpush2.bf16.msra.mxu0 %v1746
      %1781 = vmatprep.subr.bf16.mxu0 0
      %1782 = vmatpush2.bf16.msra.mxu0 %v1745
      %1783 = vmatprep.subr.bf16.mxu0 0
      %1784 = vmatpush2.bf16.msra.mxu0 %v1744
      %1785 = vmatprep.subr.bf16.mxu0 0
      %1786 = vmatpush2.bf16.msra.mxu0 %v1743
      %1787 = vmatprep.subr.bf16.mxu0 0
      %1788 = vmatpush2.bf16.msra.mxu0 %v1742
      %1789 = vmatprep.subr.bf16.mxu0 0
      %1790 = vmatpush2.bf16.msra.mxu0 %v1741
      %1791 = vmatprep.subr.bf16.mxu0 0
      %1792 = vmatpush2.bf16.msra.mxu0 %v1740
      %1793 = vmatprep.subr.bf16.mxu0 0
      %1794 = vmatpush2.bf16.msra.mxu0 %v1739
      %1795 = vmatprep.mubr.bf16.mxu0 %v569
      %1796 = vmatmul.mubr.bf16.gmra.mxu0 %v568
      %v1797 = vpop.f32.mrf.mxu0
      %v1798 = vadd.f32 0.0, %v1797
      %v1799 = vpop.f32.mrf.mxu0
      %v1800 = vpop.f32.mrf.mxu0
      %v1801 = vpop.f32.mrf.mxu0
      %1802 = vdwg.mxu0
      %v1803 = vpack.c.bf16 %v1798, %v1798
      %v1805 = vsel %vm331, %v1529, 0
      %v1808 = vsel %vm335, %v1803, 0
      %1810 = vmatprep.subr.bf16.mxu0 0
      %1811 = vmatpush1.bf16.msra.mxu0 0
      %1812 = vmatprep.subr.bf16.mxu0 0
      %1813 = vmatpush1.bf16.msra.mxu0 0
      %1814 = vmatprep.subr.bf16.mxu0 0
      %1815 = vmatpush1.bf16.msra.mxu0 0
      %1816 = vmatprep.subr.bf16.mxu0 0
      %1817 = vmatpush1.bf16.msra.mxu0 0
      %1818 = vmatprep.subr.bf16.mxu0 0
      %1819 = vmatpush1.bf16.msra.mxu0 0
      %1820 = vmatprep.subr.bf16.mxu0 0
      %1821 = vmatpush1.bf16.msra.mxu0 0
      %1822 = vmatprep.subr.bf16.mxu0 0
      %1823 = vmatpush1.bf16.msra.mxu0 0
      %1824 = vmatprep.subr.bf16.mxu0 0
      %1825 = vmatpush1.bf16.msra.mxu0 %v1808
      %1826 = vmatprep.subr.bf16.mxu0 0
      %1827 = vmatpush2.bf16.msra.mxu0 0
      %1828 = vmatprep.subr.bf16.mxu0 0
      %1829 = vmatpush2.bf16.msra.mxu0 0
      %1830 = vmatprep.subr.bf16.mxu0 0
      %1831 = vmatpush2.bf16.msra.mxu0 0
      %1832 = vmatprep.subr.bf16.mxu0 0
      %1833 = vmatpush2.bf16.msra.mxu0 0
      %1834 = vmatprep.subr.bf16.mxu0 0
      %1835 = vmatpush2.bf16.msra.mxu0 0
      %1836 = vmatprep.subr.bf16.mxu0 0
      %1837 = vmatpush2.bf16.msra.mxu0 0
      %1838 = vmatprep.subr.bf16.mxu0 0
      %1839 = vmatpush2.bf16.msra.mxu0 0
      %1840 = vmatprep.subr.bf16.mxu0 0
      %1841 = vmatpush2.bf16.msra.mxu0 0
      %1842 = vmatprep.mubr.bf16.mxu0 0
      %1843 = vmatmul.mubr.bf16.gmra.mxu0 %v1805
      %v1844 = vpop.f32.mrf.mxu0
      %v1845 = vadd.f32 0.0, %v1844
      %v1846 = vpop.f32.mrf.mxu0
      %v1847 = vpop.f32.mrf.mxu0
      %v1848 = vpop.f32.mrf.mxu0
      %1849 = vdwg.mxu0
      %v1850 = vadd.f32 %v1666, %v1845
      %1851 = vset.pattern.permute.xlu0 2
      %1852 = vperm.xlu0 %1851, %v278
      %v1853 = vpop.permute.xlu0 %1852
      %v1855 = vadd.f32 %v1850, %v1853
      %vm1856 = vcmask 523264
      %1857 = vst.msk [vmem:[%s276] sm:$0xff] %vm1856, %v1855
      %p1858 = scmp.lt.s32.totalorder %s18, 1
      %s1859 = scalar_select %p1858, %s18, 1
      %s1860 = smul.addr %s1859, 8
      %s1861 = scalar_lea.vmem %s7, %s1860
      // Predicated region
      $region49: #{block_type3_forward.1} parent=47 // pred_check
        %p1862 = pneg %p188
      $region50: #{block_type3_forward.1} parent=47 // pred_check_branch
        %1864 = sbr.rel (%p1862) target = $region52
      $region51: #{block_type3_forward.1} parent=47 // pred_region
        _
      $region52: #{block_type3_forward.1} parent=47 // pred_fallthru
        _
    $region48: #{block_type3_forward.1} parent=5 // pred_fallthru
      _
    %p1865 = scmp.le.s32.totalorder 2, %s13
    // Predicated region
    $region53: #{block_type3_forward.1} parent=5 // pred_check
      %p1866 = pneg %p1865
    $region54: #{block_type3_forward.1} parent=5 // pred_check_branch
      %1868 = sbr.rel (%p1866) target = $region56
    $region55: #{block_type3_forward.1} parent=5 // pred_region
      %s1869 = ssub.s32 %s13, 2
      // Predicated region
      $region57: #{block_type3_forward.1} parent=55 // pred_check
        %p1870 = pneg %p194
      $region58: #{block_type3_forward.1} parent=55 // pred_check_branch
        %1872 = sbr.rel (%p1870) target = $region60
      $region59: #{block_type3_forward.1} parent=55 // pred_region
        %p1873 = scmp.lt.s32.totalorder %s19, 1
        %s1874 = scalar_select %p1873, %s19, 1
        %s1875 = smul.addr %s1874, 8
        %s1876 = scalar_lea.vmem %s7, %s1875
      $region60: #{block_type3_forward.1} parent=55 // pred_fallthru
        _
    $region56: #{block_type3_forward.1} parent=5 // pred_fallthru
      _
  $region6: #{block_type3_forward.1} parent=0 // loop_footer
    %s17 = sadd.s32 1, %s13
  $region7: #{block_type3_forward.1} parent=0 // loop_footer_branch
    %12 = sbr.rel target = $region3
  $region8: #{block_type3_forward.1} parent=0 // loop_exit
    _

</llo_original>
